<compile_context>
chip_gen: v7x
topology: tpu7x:2x2x1
jax: 0.10.0
libtpu: 0.0.40
codegen_flags: <defaults>
</compile_context>

<pallas_src>
import math

import jax
import jax.numpy as jnp
import numpy as np
from jax import lax
from jax.experimental import pallas as pl
from jax.experimental.pallas import tpu as pltpu


def rec_enc_kernel(x_ref, wih_ref, whh_ref, b_ref, ctx_ref, rep_ref, alpha_ref):
    """Whole-sequence bidirectional LSTM + attention, single invocation.

    x_ref:   (T, B, I)   sequence-major input
    wih_ref: (2I, 8H)    block-diag fused input-projection weights,
                         column blocks [i_f|i_b|f_f|f_b|o_f|o_b|g_f|g_b]
    whh_ref: (2H, 8H)    block-diag fused recurrent weights, same column order
    b_ref:   (1, 8H)     b_ih + b_hh for both directions, same column order
    ctx_ref: (1, 2H)     attention context vector [ctx_fwd | ctx_bwd]
    rep_ref:   (B, 2H)   attention-weighted representation
    alpha_ref: (B, T)    attention weights (softmax over T), batch-major
    """
    T, B, I = x_ref.shape
    H8 = whh_ref.shape[-1]
    H = H8 // 8
    H2, H4, H6 = 2 * H, 4 * H, 6 * H

    # Hoisted loads; bias pre-broadcast once.
    wih = wih_ref[...]                                   # (2I, 8H)
    whh = whh_ref[...]                                   # (2H, 8H)
    bias = jnp.broadcast_to(b_ref[...], (B, H8))         # (B, 8H)
    ctx_f = ctx_ref[:, 0:H]                              # (1, H)
    ctx_b = ctx_ref[:, H:H2]                             # (1, H)

    # ---- Pre-pass: input projections for all T steps (off the recurrence
    # critical path).  xg[s] already pairs the forward input x[s] with the
    # backward input x[T-1-s], so the recurrence needs no per-step concat.
    xg = []
    for s in range(T):
        xp = jnp.concatenate([x_ref[s], x_ref[T - 1 - s]], axis=-1)   # (B, 2I)
        xg.append(jnp.dot(xp, wih, preferred_element_type=jnp.float32) + bias)

    # ---- Fused bidirectional recurrence, fully unrolled (T static).
    # State is a single (B, 2H) value: [:, :H] = forward h, [:, H:] = backward h.
    h = jnp.zeros((B, H2), jnp.float32)
    c = jnp.zeros((B, H2), jnp.float32)
    h_f = [None] * T      # forward hidden at time t   (kept in vregs)
    h_b = [None] * T      # backward hidden at time t  (kept in vregs)
    sc_f = [None] * T     # fwd attention score contribution at time t, (B, 1)
    sc_b = [None] * T     # bwd attention score contribution at time t, (B, 1)

    for s in range(T):
        # One MXU matmul per step on the critical path: (B,2H) @ (2H,8H).
        g = xg[s] + jnp.dot(h, whh, preferred_element_type=jnp.float32)  # (B, 8H)
        sig = jax.nn.sigmoid(g[:, 0:H6])      # [i_f|i_b|f_f|f_b|o_f|o_b]
        tnh = jnp.tanh(g[:, H6:H8])           # [g_f|g_b]
        c = sig[:, H2:H4] * c + sig[:, 0:H2] * tnh
        h = sig[:, H4:H6] * jnp.tanh(c)
        # Time-aligned bookkeeping (forward at t=s, backward at t=T-1-s).
        h_f[s] = h[:, 0:H]
        h_b[T - 1 - s] = h[:, H:H2]
        # Attention score contributions (XLU lane-reduce, hides under MXU/EUP).
        sc_f[s] = jnp.sum(h[:, 0:H] * ctx_f, axis=-1, keepdims=True)
        sc_b[T - 1 - s] = jnp.sum(h[:, H:H2] * ctx_b, axis=-1, keepdims=True)

    # ---- Attention softmax over the sequence axis, batch-major throughout.
    scores = jnp.concatenate([sc_f[t] + sc_b[t] for t in range(T)], axis=-1)  # (B, T)
    m = jnp.max(scores, axis=-1, keepdims=True)
    e = jnp.exp(scores - m)
    inv = pl.reciprocal(jnp.sum(e, axis=-1, keepdims=True), approx=True)
    alpha = e * inv                                                           # (B, T)
    alpha_ref[...] = alpha

    # repres[b, :] = sum_t alpha[b, t] * [h_f(t) | h_b(t)]
    rep_f = jnp.zeros((B, H), jnp.float32)
    rep_b = jnp.zeros((B, H), jnp.float32)
    for t in range(T):
        a_t = alpha[:, t:t + 1]
        rep_f = rep_f + a_t * h_f[t]
        rep_b = rep_b + a_t * h_b[t]
    rep_ref[...] = jnp.concatenate([rep_f, rep_b], axis=-1)                   # (B, 2H)


def recurrent_encoder_forward(x, kp):
    """x: (T, B, I).  Returns (hm_rep (B, 1, 2H), bin_alpha (B, T))."""
    T, B, I = x.shape
    H8 = kp["whh"].shape[-1]
    H = H8 // 8
    D = 2 * H

    # One batch block covers the whole (tiny) batch; the grid/BlockSpec
    # structure is kept so a batched variant just raises B / block size.
    BB = B
    grid = (pl.cdiv(B, BB),)

    rep, alpha = pl.pallas_call(
        rec_enc_kernel,
        out_shape=(jax.ShapeDtypeStruct((B, D), jnp.float32),
                   jax.ShapeDtypeStruct((B, T), jnp.float32)),
        grid_spec=pltpu.PrefetchScalarGridSpec(
            num_scalar_prefetch=0,
            grid=grid,
            in_specs=[
                pl.BlockSpec((T, BB, I), lambda i: (0, i, 0)),
                pl.BlockSpec(kp["wih"].shape, lambda i: (0, 0)),  # resident
                pl.BlockSpec(kp["whh"].shape, lambda i: (0, 0)),  # resident
                pl.BlockSpec(kp["b"].shape, lambda i: (0, 0)),    # resident
                pl.BlockSpec(kp["ctx"].shape, lambda i: (0, 0)),  # resident
            ],
            out_specs=(pl.BlockSpec((BB, D), lambda i: (i, 0)),
                       pl.BlockSpec((BB, T), lambda i: (i, 0))),
        ),
        compiler_params=pltpu.CompilerParams(
            dimension_semantics=("parallel",)),
    )(x, kp["wih"], kp["whh"], kp["b"], kp["ctx"])

    hm_rep = rep.reshape(B, 1, D)   # matches torch.bmm result (B, 1, 2H)
    return hm_rep, alpha


def init_torch_params(key, I, H, D):
    """Deterministic init mirroring nn.LSTM / rec_attention parameter layout."""
    bound = 1.0 / math.sqrt(H)
    ks = jax.random.split(key, 9)

    def u(k, shape, b):
        return jax.random.uniform(k, shape, jnp.float32, minval=-b, maxval=b)

    # PyTorch LSTM params: weight_ih (4H, I), weight_hh (4H, H), biases (4H,),
    # rows stacked in gate order [i, f, g, o].
    return dict(
        W_ih_f=u(ks[0], (4 * H, I), bound), W_hh_f=u(ks[1], (4 * H, H), bound),
        b_ih_f=u(ks[2], (4 * H,), bound), b_hh_f=u(ks[3], (4 * H,), bound),
        W_ih_b=u(ks[4], (4 * H, I), bound), W_hh_b=u(ks[5], (4 * H, H), bound),
        b_ih_b=u(ks[6], (4 * H,), bound), b_hh_b=u(ks[7], (4 * H,), bound),
        ctx=jax.random.uniform(ks[8], (D, 1), jnp.float32, minval=-0.1, maxval=0.1),
    )


def pack_params(tp):
    """Pack PyTorch-layout weights into the fused block-diagonal kernel layout.

    Column blocks (width H each) over 8H lanes: [i_f|i_b|f_f|f_b|o_f|o_b|g_f|g_b]
      wih (2I, 8H): rows 0:I act on x_t (fwd), rows I:2I act on x_{T-1-t} (bwd)
      whh (2H, 8H): rows 0:H act on h_fwd,      rows H:2H act on h_bwd
      b   (1, 8H) : b_ih + b_hh per gate/direction
      ctx (1, 2H) : attention context vector, transposed
    """
    H = tp["W_hh_f"].shape[1]
    I = tp["W_ih_f"].shape[1]

    def gates(a):  # (4H, X) or (4H,) -> i, f, g, o slices
        return dict(i=a[0:H], f=a[H:2 * H], g=a[2 * H:3 * H], o=a[3 * H:4 * H])

    gi = dict(f=gates(tp["W_ih_f"]), b=gates(tp["W_ih_b"]))
    gh = dict(f=gates(tp["W_hh_f"]), b=gates(tp["W_hh_b"]))
    gb = dict(f=gates(tp["b_ih_f"] + tp["b_hh_f"]),
              b=gates(tp["b_ih_b"] + tp["b_hh_b"]))

    zi = jnp.zeros((I, H), jnp.float32)
    zh = jnp.zeros((H, H), jnp.float32)
    wih_cols, whh_cols, b_cols = [], [], []
    for gate in ("i", "f", "o", "g"):        # sigmoid gates first, tanh (g) last
        for d in ("f", "b"):
            if d == "f":
                wih_cols.append(jnp.concatenate([gi["f"][gate].T, zi], axis=0))
                whh_cols.append(jnp.concatenate([gh["f"][gate].T, zh], axis=0))
            else:
                wih_cols.append(jnp.concatenate([zi, gi["b"][gate].T], axis=0))
                whh_cols.append(jnp.concatenate([zh, gh["b"][gate].T], axis=0))
            b_cols.append(gb[d][gate])

    return dict(
        wih=jnp.concatenate(wih_cols, axis=1),           # (2I, 8H)
        whh=jnp.concatenate(whh_cols, axis=1),           # (2H, 8H)
        b=jnp.concatenate(b_cols).reshape(1, 8 * H),     # (1, 8H)
        ctx=tp["ctx"].reshape(1, 2 * H),                 # (1, 2H)
    )


def reference_forward(x, tp):
    """Pure-JAX reference of the PyTorch module's math (for correctness check)."""
    T, B, _ = x.shape
    H = tp["W_hh_f"].shape[1]

    def run(W_ih, W_hh, b_ih, b_hh, xs):
        def step(carry, x_t):
            h, c = carry
            g = x_t @ W_ih.T + b_ih + h @ W_hh.T + b_hh
            i, f, gg, o = jnp.split(g, 4, axis=-1)
            c_new = jax.nn.sigmoid(f) * c + jax.nn.sigmoid(i) * jnp.tanh(gg)
            h_new = jax.nn.sigmoid(o) * jnp.tanh(c_new)
            return (h_new, c_new), h_new

        init = (jnp.zeros((B, H), jnp.float32), jnp.zeros((B, H), jnp.float32))
        _, hs = lax.scan(step, init, xs)
        return hs

    fwd = run(tp["W_ih_f"], tp["W_hh_f"], tp["b_ih_f"], tp["b_hh_f"], x)
    bwd = run(tp["W_ih_b"], tp["W_hh_b"], tp["b_ih_b"], tp["b_hh_b"], x[::-1])[::-1]
    bin_out = jnp.concatenate([fwd, bwd], axis=-1).transpose(1, 0, 2)  # (B, T, 2H)
    scores = jnp.einsum("btd,do->bt", bin_out, tp["ctx"])              # (B, T)
    alpha = jax.nn.softmax(scores, axis=1)
    rep = jnp.einsum("bt,btd->bd", alpha, bin_out)[:, None, :]
    return rep, alpha


if __name__ == "__main__":
    # n_bins (seq) = 8, batch = 2, ip_bin_size = 4, H = 16, bin_rep_size = 32
    T, B, I = 8, 2, 4
    H = 16
    D = 2 * H

    key = jax.random.PRNGKey(0)
    kx, kp = jax.random.split(key)
    x = jax.random.normal(kx, (T, B, I), dtype=jnp.float32)
    torch_params = init_torch_params(kp, I, H, D)
    kernel_params = pack_params(torch_params)

    hm_rep, bin_alpha = recurrent_encoder_forward(x, kernel_params)
    jax.block_until_ready((hm_rep, bin_alpha))

    ref_rep, ref_alpha = reference_forward(x, torch_params)
    np.testing.assert_allclose(np.asarray(hm_rep), np.asarray(ref_rep),
                               atol=2e-3, rtol=2e-3)
    np.testing.assert_allclose(np.asarray(bin_alpha), np.asarray(ref_alpha),
                               atol=2e-3, rtol=2e-3)
    assert hm_rep.shape == (B, 1, D) and bin_alpha.shape == (B, T)

    print("KERNEL_OK")
</pallas_src>

<mosaic_0001>
module attributes {stable_mosaic.version = 11 : i64} {
  func.func @rec_enc_kernel(%arg0: i32, %arg1: memref<8x2x4xf32, #tpu.memory_space<vmem>>, %arg2: memref<8x128xf32, #tpu.memory_space<vmem>>, %arg3: memref<32x128xf32, #tpu.memory_space<vmem>>, %arg4: memref<1x128xf32, #tpu.memory_space<vmem>>, %arg5: memref<1x32xf32, #tpu.memory_space<vmem>>, %arg6: memref<2x32xf32, #tpu.memory_space<vmem>>, %arg7: memref<2x8xf32, #tpu.memory_space<vmem>>) attributes {dimension_semantics = [#tpu.dimension_semantics<parallel>], iteration_bounds = array<i64: 1>, scalar_prefetch = 0 : i64, scratch_operands = 0 : i64, tpu.core_type = #tpu.core_type<tc>, window_params = [{transform_indices = @transform_0, window_bounds = array<i64: 8, 2, 4>}, {pipeline_mode = #tpu.pipeline_mode<synchronous>, transform_indices = @transform_1, window_bounds = array<i64: 8, 128>}, {pipeline_mode = #tpu.pipeline_mode<synchronous>, transform_indices = @transform_2, window_bounds = array<i64: 32, 128>}, {pipeline_mode = #tpu.pipeline_mode<synchronous>, transform_indices = @transform_3, window_bounds = array<i64: 1, 128>}, {pipeline_mode = #tpu.pipeline_mode<synchronous>, transform_indices = @transform_4, window_bounds = array<i64: 1, 32>}, {transform_indices = @transform_5, window_bounds = array<i64: 2, 32>}, {transform_indices = @transform_6, window_bounds = array<i64: 2, 8>}]} {
    %c0 = arith.constant 0 : index
    %c0_0 = arith.constant 0 : index
    %0 = vector.load %arg2[%c0, %c0_0] : memref<8x128xf32, #tpu.memory_space<vmem>>, vector<8x128xf32>
    %c0_1 = arith.constant 0 : index
    %c0_2 = arith.constant 0 : index
    %1 = vector.load %arg3[%c0_1, %c0_2] : memref<32x128xf32, #tpu.memory_space<vmem>>, vector<32x128xf32>
    %c0_3 = arith.constant 0 : index
    %c0_4 = arith.constant 0 : index
    %2 = vector.load %arg4[%c0_3, %c0_4] : memref<1x128xf32, #tpu.memory_space<vmem>>, vector<1x128xf32>
    %3 = vector.shape_cast %2 : vector<1x128xf32> to vector<1x128xf32>
    %4 = vector.broadcast %3 : vector<1x128xf32> to vector<2x128xf32>
    %c0_5 = arith.constant 0 : index
    %c0_6 = arith.constant 0 : index
    %5 = vector.load %arg5[%c0_5, %c0_6] : memref<1x32xf32, #tpu.memory_space<vmem>>, vector<1x16xf32>
    %c0_7 = arith.constant 0 : index
    %c16 = arith.constant 16 : index
    %6 = vector.load %arg5[%c0_7, %c16] : memref<1x32xf32, #tpu.memory_space<vmem>>, vector<1x16xf32>
    %c0_8 = arith.constant 0 : index
    %c0_9 = arith.constant 0 : index
    %c0_10 = arith.constant 0 : index
    %7 = vector.load %arg1[%c0_8, %c0_9, %c0_10] : memref<8x2x4xf32, #tpu.memory_space<vmem>>, vector<1x2x4xf32>
    %8 = vector.shape_cast %7 : vector<1x2x4xf32> to vector<2x4xf32>
    %c7 = arith.constant 7 : index
    %c0_11 = arith.constant 0 : index
    %c0_12 = arith.constant 0 : index
    %9 = vector.load %arg1[%c7, %c0_11, %c0_12] : memref<8x2x4xf32, #tpu.memory_space<vmem>>, vector<1x2x4xf32>
    %10 = vector.shape_cast %9 : vector<1x2x4xf32> to vector<2x4xf32>
    %11 = tpu.concatenate %8, %10 in 1 : vector<2x4xf32>, vector<2x4xf32> -> vector<2x8xf32>
    %cst = arith.constant dense<0.000000e+00> : vector<2x128xf32>
    %12 = tpu.matmul %11, %0, %cst {dimension_numbers = #tpu.dot_dimension_numbers<[1], [0], [0], [1], [0, 0, 1, 1], [], []>} : vector<2x8xf32>, vector<8x128xf32>, vector<2x128xf32> -> vector<2x128xf32>
    %13 = arith.addf %12, %4 : vector<2x128xf32>
    %c1 = arith.constant 1 : index
    %c0_13 = arith.constant 0 : index
    %c0_14 = arith.constant 0 : index
    %14 = vector.load %arg1[%c1, %c0_13, %c0_14] : memref<8x2x4xf32, #tpu.memory_space<vmem>>, vector<1x2x4xf32>
    %15 = vector.shape_cast %14 : vector<1x2x4xf32> to vector<2x4xf32>
    %c6 = arith.constant 6 : index
    %c0_15 = arith.constant 0 : index
    %c0_16 = arith.constant 0 : index
    %16 = vector.load %arg1[%c6, %c0_15, %c0_16] : memref<8x2x4xf32, #tpu.memory_space<vmem>>, vector<1x2x4xf32>
    %17 = vector.shape_cast %16 : vector<1x2x4xf32> to vector<2x4xf32>
    %18 = tpu.concatenate %15, %17 in 1 : vector<2x4xf32>, vector<2x4xf32> -> vector<2x8xf32>
    %cst_17 = arith.constant dense<0.000000e+00> : vector<2x128xf32>
    %19 = tpu.matmul %18, %0, %cst_17 {dimension_numbers = #tpu.dot_dimension_numbers<[1], [0], [0], [1], [0, 0, 1, 1], [], []>} : vector<2x8xf32>, vector<8x128xf32>, vector<2x128xf32> -> vector<2x128xf32>
    %20 = arith.addf %19, %4 : vector<2x128xf32>
    %c2 = arith.constant 2 : index
    %c0_18 = arith.constant 0 : index
    %c0_19 = arith.constant 0 : index
    %21 = vector.load %arg1[%c2, %c0_18, %c0_19] : memref<8x2x4xf32, #tpu.memory_space<vmem>>, vector<1x2x4xf32>
    %22 = vector.shape_cast %21 : vector<1x2x4xf32> to vector<2x4xf32>
    %c5 = arith.constant 5 : index
    %c0_20 = arith.constant 0 : index
    %c0_21 = arith.constant 0 : index
    %23 = vector.load %arg1[%c5, %c0_20, %c0_21] : memref<8x2x4xf32, #tpu.memory_space<vmem>>, vector<1x2x4xf32>
    %24 = vector.shape_cast %23 : vector<1x2x4xf32> to vector<2x4xf32>
    %25 = tpu.concatenate %22, %24 in 1 : vector<2x4xf32>, vector<2x4xf32> -> vector<2x8xf32>
    %cst_22 = arith.constant dense<0.000000e+00> : vector<2x128xf32>
    %26 = tpu.matmul %25, %0, %cst_22 {dimension_numbers = #tpu.dot_dimension_numbers<[1], [0], [0], [1], [0, 0, 1, 1], [], []>} : vector<2x8xf32>, vector<8x128xf32>, vector<2x128xf32> -> vector<2x128xf32>
    %27 = arith.addf %26, %4 : vector<2x128xf32>
    %c3 = arith.constant 3 : index
    %c0_23 = arith.constant 0 : index
    %c0_24 = arith.constant 0 : index
    %28 = vector.load %arg1[%c3, %c0_23, %c0_24] : memref<8x2x4xf32, #tpu.memory_space<vmem>>, vector<1x2x4xf32>
    %29 = vector.shape_cast %28 : vector<1x2x4xf32> to vector<2x4xf32>
    %c4 = arith.constant 4 : index
    %c0_25 = arith.constant 0 : index
    %c0_26 = arith.constant 0 : index
    %30 = vector.load %arg1[%c4, %c0_25, %c0_26] : memref<8x2x4xf32, #tpu.memory_space<vmem>>, vector<1x2x4xf32>
    %31 = vector.shape_cast %30 : vector<1x2x4xf32> to vector<2x4xf32>
    %32 = tpu.concatenate %29, %31 in 1 : vector<2x4xf32>, vector<2x4xf32> -> vector<2x8xf32>
    %cst_27 = arith.constant dense<0.000000e+00> : vector<2x128xf32>
    %33 = tpu.matmul %32, %0, %cst_27 {dimension_numbers = #tpu.dot_dimension_numbers<[1], [0], [0], [1], [0, 0, 1, 1], [], []>} : vector<2x8xf32>, vector<8x128xf32>, vector<2x128xf32> -> vector<2x128xf32>
    %34 = arith.addf %33, %4 : vector<2x128xf32>
    %c4_28 = arith.constant 4 : index
    %c0_29 = arith.constant 0 : index
    %c0_30 = arith.constant 0 : index
    %35 = vector.load %arg1[%c4_28, %c0_29, %c0_30] : memref<8x2x4xf32, #tpu.memory_space<vmem>>, vector<1x2x4xf32>
    %36 = vector.shape_cast %35 : vector<1x2x4xf32> to vector<2x4xf32>
    %c3_31 = arith.constant 3 : index
    %c0_32 = arith.constant 0 : index
    %c0_33 = arith.constant 0 : index
    %37 = vector.load %arg1[%c3_31, %c0_32, %c0_33] : memref<8x2x4xf32, #tpu.memory_space<vmem>>, vector<1x2x4xf32>
    %38 = vector.shape_cast %37 : vector<1x2x4xf32> to vector<2x4xf32>
    %39 = tpu.concatenate %36, %38 in 1 : vector<2x4xf32>, vector<2x4xf32> -> vector<2x8xf32>
    %cst_34 = arith.constant dense<0.000000e+00> : vector<2x128xf32>
    %40 = tpu.matmul %39, %0, %cst_34 {dimension_numbers = #tpu.dot_dimension_numbers<[1], [0], [0], [1], [0, 0, 1, 1], [], []>} : vector<2x8xf32>, vector<8x128xf32>, vector<2x128xf32> -> vector<2x128xf32>
    %41 = arith.addf %40, %4 : vector<2x128xf32>
    %c5_35 = arith.constant 5 : index
    %c0_36 = arith.constant 0 : index
    %c0_37 = arith.constant 0 : index
    %42 = vector.load %arg1[%c5_35, %c0_36, %c0_37] : memref<8x2x4xf32, #tpu.memory_space<vmem>>, vector<1x2x4xf32>
    %43 = vector.shape_cast %42 : vector<1x2x4xf32> to vector<2x4xf32>
    %c2_38 = arith.constant 2 : index
    %c0_39 = arith.constant 0 : index
    %c0_40 = arith.constant 0 : index
    %44 = vector.load %arg1[%c2_38, %c0_39, %c0_40] : memref<8x2x4xf32, #tpu.memory_space<vmem>>, vector<1x2x4xf32>
    %45 = vector.shape_cast %44 : vector<1x2x4xf32> to vector<2x4xf32>
    %46 = tpu.concatenate %43, %45 in 1 : vector<2x4xf32>, vector<2x4xf32> -> vector<2x8xf32>
    %cst_41 = arith.constant dense<0.000000e+00> : vector<2x128xf32>
    %47 = tpu.matmul %46, %0, %cst_41 {dimension_numbers = #tpu.dot_dimension_numbers<[1], [0], [0], [1], [0, 0, 1, 1], [], []>} : vector<2x8xf32>, vector<8x128xf32>, vector<2x128xf32> -> vector<2x128xf32>
    %48 = arith.addf %47, %4 : vector<2x128xf32>
    %c6_42 = arith.constant 6 : index
    %c0_43 = arith.constant 0 : index
    %c0_44 = arith.constant 0 : index
    %49 = vector.load %arg1[%c6_42, %c0_43, %c0_44] : memref<8x2x4xf32, #tpu.memory_space<vmem>>, vector<1x2x4xf32>
    %50 = vector.shape_cast %49 : vector<1x2x4xf32> to vector<2x4xf32>
    %c1_45 = arith.constant 1 : index
    %c0_46 = arith.constant 0 : index
    %c0_47 = arith.constant 0 : index
    %51 = vector.load %arg1[%c1_45, %c0_46, %c0_47] : memref<8x2x4xf32, #tpu.memory_space<vmem>>, vector<1x2x4xf32>
    %52 = vector.shape_cast %51 : vector<1x2x4xf32> to vector<2x4xf32>
    %53 = tpu.concatenate %50, %52 in 1 : vector<2x4xf32>, vector<2x4xf32> -> vector<2x8xf32>
    %cst_48 = arith.constant dense<0.000000e+00> : vector<2x128xf32>
    %54 = tpu.matmul %53, %0, %cst_48 {dimension_numbers = #tpu.dot_dimension_numbers<[1], [0], [0], [1], [0, 0, 1, 1], [], []>} : vector<2x8xf32>, vector<8x128xf32>, vector<2x128xf32> -> vector<2x128xf32>
    %55 = arith.addf %54, %4 : vector<2x128xf32>
    %c7_49 = arith.constant 7 : index
    %c0_50 = arith.constant 0 : index
    %c0_51 = arith.constant 0 : index
    %56 = vector.load %arg1[%c7_49, %c0_50, %c0_51] : memref<8x2x4xf32, #tpu.memory_space<vmem>>, vector<1x2x4xf32>
    %57 = vector.shape_cast %56 : vector<1x2x4xf32> to vector<2x4xf32>
    %c0_52 = arith.constant 0 : index
    %c0_53 = arith.constant 0 : index
    %c0_54 = arith.constant 0 : index
    %58 = vector.load %arg1[%c0_52, %c0_53, %c0_54] : memref<8x2x4xf32, #tpu.memory_space<vmem>>, vector<1x2x4xf32>
    %59 = vector.shape_cast %58 : vector<1x2x4xf32> to vector<2x4xf32>
    %60 = tpu.concatenate %57, %59 in 1 : vector<2x4xf32>, vector<2x4xf32> -> vector<2x8xf32>
    %cst_55 = arith.constant dense<0.000000e+00> : vector<2x128xf32>
    %61 = tpu.matmul %60, %0, %cst_55 {dimension_numbers = #tpu.dot_dimension_numbers<[1], [0], [0], [1], [0, 0, 1, 1], [], []>} : vector<2x8xf32>, vector<8x128xf32>, vector<2x128xf32> -> vector<2x128xf32>
    %62 = arith.addf %61, %4 : vector<2x128xf32>
    %cst_56 = arith.constant 0.000000e+00 : f32
    %63 = vector.broadcast %cst_56 : f32 to vector<2x32xf32>
    %cst_57 = arith.constant 0.000000e+00 : f32
    %64 = vector.broadcast %cst_57 : f32 to vector<2x32xf32>
    %cst_58 = arith.constant dense<0.000000e+00> : vector<2x128xf32>
    %65 = tpu.matmul %63, %1, %cst_58 {dimension_numbers = #tpu.dot_dimension_numbers<[1], [0], [0], [1], [0, 0, 1, 1], [], []>} : vector<2x32xf32>, vector<32x128xf32>, vector<2x128xf32> -> vector<2x128xf32>
    %66 = arith.addf %13, %65 : vector<2x128xf32>
    %67 = vector.extract_strided_slice %66 {offsets = [0, 0], sizes = [2, 96], strides = [1, 1]} : vector<2x128xf32> to vector<2x96xf32>
    %68 = arith.negf %67 : vector<2x96xf32>
    %69 = math.exp %68 : vector<2x96xf32>
    %cst_59 = arith.constant 1.000000e+00 : f32
    %70 = vector.broadcast %cst_59 : f32 to vector<2x96xf32>
    %71 = arith.addf %70, %69 : vector<2x96xf32>
    %72 = arith.divf %70, %71 : vector<2x96xf32>
    %73 = vector.extract_strided_slice %66 {offsets = [0, 96], sizes = [2, 32], strides = [1, 1]} : vector<2x128xf32> to vector<2x32xf32>
    %74 = math.tanh %73 : vector<2x32xf32>
    %75 = vector.extract_strided_slice %72 {offsets = [0, 32], sizes = [2, 32], strides = [1, 1]} : vector<2x96xf32> to vector<2x32xf32>
    %76 = arith.mulf %75, %64 : vector<2x32xf32>
    %77 = vector.extract_strided_slice %72 {offsets = [0, 0], sizes = [2, 32], strides = [1, 1]} : vector<2x96xf32> to vector<2x32xf32>
    %78 = arith.mulf %77, %74 : vector<2x32xf32>
    %79 = arith.addf %76, %78 : vector<2x32xf32>
    %80 = vector.extract_strided_slice %72 {offsets = [0, 64], sizes = [2, 32], strides = [1, 1]} : vector<2x96xf32> to vector<2x32xf32>
    %81 = math.tanh %79 : vector<2x32xf32>
    %82 = arith.mulf %80, %81 : vector<2x32xf32>
    %83 = vector.extract_strided_slice %82 {offsets = [0, 0], sizes = [2, 16], strides = [1, 1]} : vector<2x32xf32> to vector<2x16xf32>
    %84 = vector.extract_strided_slice %82 {offsets = [0, 16], sizes = [2, 16], strides = [1, 1]} : vector<2x32xf32> to vector<2x16xf32>
    %85 = vector.extract_strided_slice %82 {offsets = [0, 0], sizes = [2, 16], strides = [1, 1]} : vector<2x32xf32> to vector<2x16xf32>
    %86 = vector.broadcast %5 : vector<1x16xf32> to vector<2x16xf32>
    %87 = arith.mulf %85, %86 : vector<2x16xf32>
    %cst_60 = arith.constant dense<0.000000e+00> : vector<2xf32>
    %88 = vector.multi_reduction <add>, %87, %cst_60 [1] : vector<2x16xf32> to vector<2xf32>
    %89 = vector.shape_cast %88 : vector<2xf32> to vector<2x1xf32>
    %90 = vector.extract_strided_slice %82 {offsets = [0, 16], sizes = [2, 16], strides = [1, 1]} : vector<2x32xf32> to vector<2x16xf32>
    %91 = vector.broadcast %6 : vector<1x16xf32> to vector<2x16xf32>
    %92 = arith.mulf %90, %91 : vector<2x16xf32>
    %cst_61 = arith.constant dense<0.000000e+00> : vector<2xf32>
    %93 = vector.multi_reduction <add>, %92, %cst_61 [1] : vector<2x16xf32> to vector<2xf32>
    %94 = vector.shape_cast %93 : vector<2xf32> to vector<2x1xf32>
    %cst_62 = arith.constant dense<0.000000e+00> : vector<2x128xf32>
    %95 = tpu.matmul %82, %1, %cst_62 {dimension_numbers = #tpu.dot_dimension_numbers<[1], [0], [0], [1], [0, 0, 1, 1], [], []>} : vector<2x32xf32>, vector<32x128xf32>, vector<2x128xf32> -> vector<2x128xf32>
    %96 = arith.addf %20, %95 : vector<2x128xf32>
    %97 = vector.extract_strided_slice %96 {offsets = [0, 0], sizes = [2, 96], strides = [1, 1]} : vector<2x128xf32> to vector<2x96xf32>
    %98 = arith.negf %97 : vector<2x96xf32>
    %99 = math.exp %98 : vector<2x96xf32>
    %cst_63 = arith.constant 1.000000e+00 : f32
    %100 = vector.broadcast %cst_63 : f32 to vector<2x96xf32>
    %101 = arith.addf %100, %99 : vector<2x96xf32>
    %102 = arith.divf %100, %101 : vector<2x96xf32>
    %103 = vector.extract_strided_slice %96 {offsets = [0, 96], sizes = [2, 32], strides = [1, 1]} : vector<2x128xf32> to vector<2x32xf32>
    %104 = math.tanh %103 : vector<2x32xf32>
    %105 = vector.extract_strided_slice %102 {offsets = [0, 32], sizes = [2, 32], strides = [1, 1]} : vector<2x96xf32> to vector<2x32xf32>
    %106 = arith.mulf %105, %79 : vector<2x32xf32>
    %107 = vector.extract_strided_slice %102 {offsets = [0, 0], sizes = [2, 32], strides = [1, 1]} : vector<2x96xf32> to vector<2x32xf32>
    %108 = arith.mulf %107, %104 : vector<2x32xf32>
    %109 = arith.addf %106, %108 : vector<2x32xf32>
    %110 = vector.extract_strided_slice %102 {offsets = [0, 64], sizes = [2, 32], strides = [1, 1]} : vector<2x96xf32> to vector<2x32xf32>
    %111 = math.tanh %109 : vector<2x32xf32>
    %112 = arith.mulf %110, %111 : vector<2x32xf32>
    %113 = vector.extract_strided_slice %112 {offsets = [0, 0], sizes = [2, 16], strides = [1, 1]} : vector<2x32xf32> to vector<2x16xf32>
    %114 = vector.extract_strided_slice %112 {offsets = [0, 16], sizes = [2, 16], strides = [1, 1]} : vector<2x32xf32> to vector<2x16xf32>
    %115 = vector.extract_strided_slice %112 {offsets = [0, 0], sizes = [2, 16], strides = [1, 1]} : vector<2x32xf32> to vector<2x16xf32>
    %116 = vector.broadcast %5 : vector<1x16xf32> to vector<2x16xf32>
    %117 = arith.mulf %115, %116 : vector<2x16xf32>
    %cst_64 = arith.constant dense<0.000000e+00> : vector<2xf32>
    %118 = vector.multi_reduction <add>, %117, %cst_64 [1] : vector<2x16xf32> to vector<2xf32>
    %119 = vector.shape_cast %118 : vector<2xf32> to vector<2x1xf32>
    %120 = vector.extract_strided_slice %112 {offsets = [0, 16], sizes = [2, 16], strides = [1, 1]} : vector<2x32xf32> to vector<2x16xf32>
    %121 = vector.broadcast %6 : vector<1x16xf32> to vector<2x16xf32>
    %122 = arith.mulf %120, %121 : vector<2x16xf32>
    %cst_65 = arith.constant dense<0.000000e+00> : vector<2xf32>
    %123 = vector.multi_reduction <add>, %122, %cst_65 [1] : vector<2x16xf32> to vector<2xf32>
    %124 = vector.shape_cast %123 : vector<2xf32> to vector<2x1xf32>
    %cst_66 = arith.constant dense<0.000000e+00> : vector<2x128xf32>
    %125 = tpu.matmul %112, %1, %cst_66 {dimension_numbers = #tpu.dot_dimension_numbers<[1], [0], [0], [1], [0, 0, 1, 1], [], []>} : vector<2x32xf32>, vector<32x128xf32>, vector<2x128xf32> -> vector<2x128xf32>
    %126 = arith.addf %27, %125 : vector<2x128xf32>
    %127 = vector.extract_strided_slice %126 {offsets = [0, 0], sizes = [2, 96], strides = [1, 1]} : vector<2x128xf32> to vector<2x96xf32>
    %128 = arith.negf %127 : vector<2x96xf32>
    %129 = math.exp %128 : vector<2x96xf32>
    %cst_67 = arith.constant 1.000000e+00 : f32
    %130 = vector.broadcast %cst_67 : f32 to vector<2x96xf32>
    %131 = arith.addf %130, %129 : vector<2x96xf32>
    %132 = arith.divf %130, %131 : vector<2x96xf32>
    %133 = vector.extract_strided_slice %126 {offsets = [0, 96], sizes = [2, 32], strides = [1, 1]} : vector<2x128xf32> to vector<2x32xf32>
    %134 = math.tanh %133 : vector<2x32xf32>
    %135 = vector.extract_strided_slice %132 {offsets = [0, 32], sizes = [2, 32], strides = [1, 1]} : vector<2x96xf32> to vector<2x32xf32>
    %136 = arith.mulf %135, %109 : vector<2x32xf32>
    %137 = vector.extract_strided_slice %132 {offsets = [0, 0], sizes = [2, 32], strides = [1, 1]} : vector<2x96xf32> to vector<2x32xf32>
    %138 = arith.mulf %137, %134 : vector<2x32xf32>
    %139 = arith.addf %136, %138 : vector<2x32xf32>
    %140 = vector.extract_strided_slice %132 {offsets = [0, 64], sizes = [2, 32], strides = [1, 1]} : vector<2x96xf32> to vector<2x32xf32>
    %141 = math.tanh %139 : vector<2x32xf32>
    %142 = arith.mulf %140, %141 : vector<2x32xf32>
    %143 = vector.extract_strided_slice %142 {offsets = [0, 0], sizes = [2, 16], strides = [1, 1]} : vector<2x32xf32> to vector<2x16xf32>
    %144 = vector.extract_strided_slice %142 {offsets = [0, 16], sizes = [2, 16], strides = [1, 1]} : vector<2x32xf32> to vector<2x16xf32>
    %145 = vector.extract_strided_slice %142 {offsets = [0, 0], sizes = [2, 16], strides = [1, 1]} : vector<2x32xf32> to vector<2x16xf32>
    %146 = vector.broadcast %5 : vector<1x16xf32> to vector<2x16xf32>
    %147 = arith.mulf %145, %146 : vector<2x16xf32>
    %cst_68 = arith.constant dense<0.000000e+00> : vector<2xf32>
    %148 = vector.multi_reduction <add>, %147, %cst_68 [1] : vector<2x16xf32> to vector<2xf32>
    %149 = vector.shape_cast %148 : vector<2xf32> to vector<2x1xf32>
    %150 = vector.extract_strided_slice %142 {offsets = [0, 16], sizes = [2, 16], strides = [1, 1]} : vector<2x32xf32> to vector<2x16xf32>
    %151 = vector.broadcast %6 : vector<1x16xf32> to vector<2x16xf32>
    %152 = arith.mulf %150, %151 : vector<2x16xf32>
    %cst_69 = arith.constant dense<0.000000e+00> : vector<2xf32>
    %153 = vector.multi_reduction <add>, %152, %cst_69 [1] : vector<2x16xf32> to vector<2xf32>
    %154 = vector.shape_cast %153 : vector<2xf32> to vector<2x1xf32>
    %cst_70 = arith.constant dense<0.000000e+00> : vector<2x128xf32>
    %155 = tpu.matmul %142, %1, %cst_70 {dimension_numbers = #tpu.dot_dimension_numbers<[1], [0], [0], [1], [0, 0, 1, 1], [], []>} : vector<2x32xf32>, vector<32x128xf32>, vector<2x128xf32> -> vector<2x128xf32>
    %156 = arith.addf %34, %155 : vector<2x128xf32>
    %157 = vector.extract_strided_slice %156 {offsets = [0, 0], sizes = [2, 96], strides = [1, 1]} : vector<2x128xf32> to vector<2x96xf32>
    %158 = arith.negf %157 : vector<2x96xf32>
    %159 = math.exp %158 : vector<2x96xf32>
    %cst_71 = arith.constant 1.000000e+00 : f32
    %160 = vector.broadcast %cst_71 : f32 to vector<2x96xf32>
    %161 = arith.addf %160, %159 : vector<2x96xf32>
    %162 = arith.divf %160, %161 : vector<2x96xf32>
    %163 = vector.extract_strided_slice %156 {offsets = [0, 96], sizes = [2, 32], strides = [1, 1]} : vector<2x128xf32> to vector<2x32xf32>
    %164 = math.tanh %163 : vector<2x32xf32>
    %165 = vector.extract_strided_slice %162 {offsets = [0, 32], sizes = [2, 32], strides = [1, 1]} : vector<2x96xf32> to vector<2x32xf32>
    %166 = arith.mulf %165, %139 : vector<2x32xf32>
    %167 = vector.extract_strided_slice %162 {offsets = [0, 0], sizes = [2, 32], strides = [1, 1]} : vector<2x96xf32> to vector<2x32xf32>
    %168 = arith.mulf %167, %164 : vector<2x32xf32>
    %169 = arith.addf %166, %168 : vector<2x32xf32>
    %170 = vector.extract_strided_slice %162 {offsets = [0, 64], sizes = [2, 32], strides = [1, 1]} : vector<2x96xf32> to vector<2x32xf32>
    %171 = math.tanh %169 : vector<2x32xf32>
    %172 = arith.mulf %170, %171 : vector<2x32xf32>
    %173 = vector.extract_strided_slice %172 {offsets = [0, 0], sizes = [2, 16], strides = [1, 1]} : vector<2x32xf32> to vector<2x16xf32>
    %174 = vector.extract_strided_slice %172 {offsets = [0, 16], sizes = [2, 16], strides = [1, 1]} : vector<2x32xf32> to vector<2x16xf32>
    %175 = vector.extract_strided_slice %172 {offsets = [0, 0], sizes = [2, 16], strides = [1, 1]} : vector<2x32xf32> to vector<2x16xf32>
    %176 = vector.broadcast %5 : vector<1x16xf32> to vector<2x16xf32>
    %177 = arith.mulf %175, %176 : vector<2x16xf32>
    %cst_72 = arith.constant dense<0.000000e+00> : vector<2xf32>
    %178 = vector.multi_reduction <add>, %177, %cst_72 [1] : vector<2x16xf32> to vector<2xf32>
    %179 = vector.shape_cast %178 : vector<2xf32> to vector<2x1xf32>
    %180 = vector.extract_strided_slice %172 {offsets = [0, 16], sizes = [2, 16], strides = [1, 1]} : vector<2x32xf32> to vector<2x16xf32>
    %181 = vector.broadcast %6 : vector<1x16xf32> to vector<2x16xf32>
    %182 = arith.mulf %180, %181 : vector<2x16xf32>
    %cst_73 = arith.constant dense<0.000000e+00> : vector<2xf32>
    %183 = vector.multi_reduction <add>, %182, %cst_73 [1] : vector<2x16xf32> to vector<2xf32>
    %184 = vector.shape_cast %183 : vector<2xf32> to vector<2x1xf32>
    %cst_74 = arith.constant dense<0.000000e+00> : vector<2x128xf32>
    %185 = tpu.matmul %172, %1, %cst_74 {dimension_numbers = #tpu.dot_dimension_numbers<[1], [0], [0], [1], [0, 0, 1, 1], [], []>} : vector<2x32xf32>, vector<32x128xf32>, vector<2x128xf32> -> vector<2x128xf32>
    %186 = arith.addf %41, %185 : vector<2x128xf32>
    %187 = vector.extract_strided_slice %186 {offsets = [0, 0], sizes = [2, 96], strides = [1, 1]} : vector<2x128xf32> to vector<2x96xf32>
    %188 = arith.negf %187 : vector<2x96xf32>
    %189 = math.exp %188 : vector<2x96xf32>
    %cst_75 = arith.constant 1.000000e+00 : f32
    %190 = vector.broadcast %cst_75 : f32 to vector<2x96xf32>
    %191 = arith.addf %190, %189 : vector<2x96xf32>
    %192 = arith.divf %190, %191 : vector<2x96xf32>
    %193 = vector.extract_strided_slice %186 {offsets = [0, 96], sizes = [2, 32], strides = [1, 1]} : vector<2x128xf32> to vector<2x32xf32>
    %194 = math.tanh %193 : vector<2x32xf32>
    %195 = vector.extract_strided_slice %192 {offsets = [0, 32], sizes = [2, 32], strides = [1, 1]} : vector<2x96xf32> to vector<2x32xf32>
    %196 = arith.mulf %195, %169 : vector<2x32xf32>
    %197 = vector.extract_strided_slice %192 {offsets = [0, 0], sizes = [2, 32], strides = [1, 1]} : vector<2x96xf32> to vector<2x32xf32>
    %198 = arith.mulf %197, %194 : vector<2x32xf32>
    %199 = arith.addf %196, %198 : vector<2x32xf32>
    %200 = vector.extract_strided_slice %192 {offsets = [0, 64], sizes = [2, 32], strides = [1, 1]} : vector<2x96xf32> to vector<2x32xf32>
    %201 = math.tanh %199 : vector<2x32xf32>
    %202 = arith.mulf %200, %201 : vector<2x32xf32>
    %203 = vector.extract_strided_slice %202 {offsets = [0, 0], sizes = [2, 16], strides = [1, 1]} : vector<2x32xf32> to vector<2x16xf32>
    %204 = vector.extract_strided_slice %202 {offsets = [0, 16], sizes = [2, 16], strides = [1, 1]} : vector<2x32xf32> to vector<2x16xf32>
    %205 = vector.extract_strided_slice %202 {offsets = [0, 0], sizes = [2, 16], strides = [1, 1]} : vector<2x32xf32> to vector<2x16xf32>
    %206 = vector.broadcast %5 : vector<1x16xf32> to vector<2x16xf32>
    %207 = arith.mulf %205, %206 : vector<2x16xf32>
    %cst_76 = arith.constant dense<0.000000e+00> : vector<2xf32>
    %208 = vector.multi_reduction <add>, %207, %cst_76 [1] : vector<2x16xf32> to vector<2xf32>
    %209 = vector.shape_cast %208 : vector<2xf32> to vector<2x1xf32>
    %210 = vector.extract_strided_slice %202 {offsets = [0, 16], sizes = [2, 16], strides = [1, 1]} : vector<2x32xf32> to vector<2x16xf32>
    %211 = vector.broadcast %6 : vector<1x16xf32> to vector<2x16xf32>
    %212 = arith.mulf %210, %211 : vector<2x16xf32>
    %cst_77 = arith.constant dense<0.000000e+00> : vector<2xf32>
    %213 = vector.multi_reduction <add>, %212, %cst_77 [1] : vector<2x16xf32> to vector<2xf32>
    %214 = vector.shape_cast %213 : vector<2xf32> to vector<2x1xf32>
    %cst_78 = arith.constant dense<0.000000e+00> : vector<2x128xf32>
    %215 = tpu.matmul %202, %1, %cst_78 {dimension_numbers = #tpu.dot_dimension_numbers<[1], [0], [0], [1], [0, 0, 1, 1], [], []>} : vector<2x32xf32>, vector<32x128xf32>, vector<2x128xf32> -> vector<2x128xf32>
    %216 = arith.addf %48, %215 : vector<2x128xf32>
    %217 = vector.extract_strided_slice %216 {offsets = [0, 0], sizes = [2, 96], strides = [1, 1]} : vector<2x128xf32> to vector<2x96xf32>
    %218 = arith.negf %217 : vector<2x96xf32>
    %219 = math.exp %218 : vector<2x96xf32>
    %cst_79 = arith.constant 1.000000e+00 : f32
    %220 = vector.broadcast %cst_79 : f32 to vector<2x96xf32>
    %221 = arith.addf %220, %219 : vector<2x96xf32>
    %222 = arith.divf %220, %221 : vector<2x96xf32>
    %223 = vector.extract_strided_slice %216 {offsets = [0, 96], sizes = [2, 32], strides = [1, 1]} : vector<2x128xf32> to vector<2x32xf32>
    %224 = math.tanh %223 : vector<2x32xf32>
    %225 = vector.extract_strided_slice %222 {offsets = [0, 32], sizes = [2, 32], strides = [1, 1]} : vector<2x96xf32> to vector<2x32xf32>
    %226 = arith.mulf %225, %199 : vector<2x32xf32>
    %227 = vector.extract_strided_slice %222 {offsets = [0, 0], sizes = [2, 32], strides = [1, 1]} : vector<2x96xf32> to vector<2x32xf32>
    %228 = arith.mulf %227, %224 : vector<2x32xf32>
    %229 = arith.addf %226, %228 : vector<2x32xf32>
    %230 = vector.extract_strided_slice %222 {offsets = [0, 64], sizes = [2, 32], strides = [1, 1]} : vector<2x96xf32> to vector<2x32xf32>
    %231 = math.tanh %229 : vector<2x32xf32>
    %232 = arith.mulf %230, %231 : vector<2x32xf32>
    %233 = vector.extract_strided_slice %232 {offsets = [0, 0], sizes = [2, 16], strides = [1, 1]} : vector<2x32xf32> to vector<2x16xf32>
    %234 = vector.extract_strided_slice %232 {offsets = [0, 16], sizes = [2, 16], strides = [1, 1]} : vector<2x32xf32> to vector<2x16xf32>
    %235 = vector.extract_strided_slice %232 {offsets = [0, 0], sizes = [2, 16], strides = [1, 1]} : vector<2x32xf32> to vector<2x16xf32>
    %236 = vector.broadcast %5 : vector<1x16xf32> to vector<2x16xf32>
    %237 = arith.mulf %235, %236 : vector<2x16xf32>
    %cst_80 = arith.constant dense<0.000000e+00> : vector<2xf32>
    %238 = vector.multi_reduction <add>, %237, %cst_80 [1] : vector<2x16xf32> to vector<2xf32>
    %239 = vector.shape_cast %238 : vector<2xf32> to vector<2x1xf32>
    %240 = vector.extract_strided_slice %232 {offsets = [0, 16], sizes = [2, 16], strides = [1, 1]} : vector<2x32xf32> to vector<2x16xf32>
    %241 = vector.broadcast %6 : vector<1x16xf32> to vector<2x16xf32>
    %242 = arith.mulf %240, %241 : vector<2x16xf32>
    %cst_81 = arith.constant dense<0.000000e+00> : vector<2xf32>
    %243 = vector.multi_reduction <add>, %242, %cst_81 [1] : vector<2x16xf32> to vector<2xf32>
    %244 = vector.shape_cast %243 : vector<2xf32> to vector<2x1xf32>
    %cst_82 = arith.constant dense<0.000000e+00> : vector<2x128xf32>
    %245 = tpu.matmul %232, %1, %cst_82 {dimension_numbers = #tpu.dot_dimension_numbers<[1], [0], [0], [1], [0, 0, 1, 1], [], []>} : vector<2x32xf32>, vector<32x128xf32>, vector<2x128xf32> -> vector<2x128xf32>
    %246 = arith.addf %55, %245 : vector<2x128xf32>
    %247 = vector.extract_strided_slice %246 {offsets = [0, 0], sizes = [2, 96], strides = [1, 1]} : vector<2x128xf32> to vector<2x96xf32>
    %248 = arith.negf %247 : vector<2x96xf32>
    %249 = math.exp %248 : vector<2x96xf32>
    %cst_83 = arith.constant 1.000000e+00 : f32
    %250 = vector.broadcast %cst_83 : f32 to vector<2x96xf32>
    %251 = arith.addf %250, %249 : vector<2x96xf32>
    %252 = arith.divf %250, %251 : vector<2x96xf32>
    %253 = vector.extract_strided_slice %246 {offsets = [0, 96], sizes = [2, 32], strides = [1, 1]} : vector<2x128xf32> to vector<2x32xf32>
    %254 = math.tanh %253 : vector<2x32xf32>
    %255 = vector.extract_strided_slice %252 {offsets = [0, 32], sizes = [2, 32], strides = [1, 1]} : vector<2x96xf32> to vector<2x32xf32>
    %256 = arith.mulf %255, %229 : vector<2x32xf32>
    %257 = vector.extract_strided_slice %252 {offsets = [0, 0], sizes = [2, 32], strides = [1, 1]} : vector<2x96xf32> to vector<2x32xf32>
    %258 = arith.mulf %257, %254 : vector<2x32xf32>
    %259 = arith.addf %256, %258 : vector<2x32xf32>
    %260 = vector.extract_strided_slice %252 {offsets = [0, 64], sizes = [2, 32], strides = [1, 1]} : vector<2x96xf32> to vector<2x32xf32>
    %261 = math.tanh %259 : vector<2x32xf32>
    %262 = arith.mulf %260, %261 : vector<2x32xf32>
    %263 = vector.extract_strided_slice %262 {offsets = [0, 0], sizes = [2, 16], strides = [1, 1]} : vector<2x32xf32> to vector<2x16xf32>
    %264 = vector.extract_strided_slice %262 {offsets = [0, 16], sizes = [2, 16], strides = [1, 1]} : vector<2x32xf32> to vector<2x16xf32>
    %265 = vector.extract_strided_slice %262 {offsets = [0, 0], sizes = [2, 16], strides = [1, 1]} : vector<2x32xf32> to vector<2x16xf32>
    %266 = vector.broadcast %5 : vector<1x16xf32> to vector<2x16xf32>
    %267 = arith.mulf %265, %266 : vector<2x16xf32>
    %cst_84 = arith.constant dense<0.000000e+00> : vector<2xf32>
    %268 = vector.multi_reduction <add>, %267, %cst_84 [1] : vector<2x16xf32> to vector<2xf32>
    %269 = vector.shape_cast %268 : vector<2xf32> to vector<2x1xf32>
    %270 = vector.extract_strided_slice %262 {offsets = [0, 16], sizes = [2, 16], strides = [1, 1]} : vector<2x32xf32> to vector<2x16xf32>
    %271 = vector.broadcast %6 : vector<1x16xf32> to vector<2x16xf32>
    %272 = arith.mulf %270, %271 : vector<2x16xf32>
    %cst_85 = arith.constant dense<0.000000e+00> : vector<2xf32>
    %273 = vector.multi_reduction <add>, %272, %cst_85 [1] : vector<2x16xf32> to vector<2xf32>
    %274 = vector.shape_cast %273 : vector<2xf32> to vector<2x1xf32>
    %cst_86 = arith.constant dense<0.000000e+00> : vector<2x128xf32>
    %275 = tpu.matmul %262, %1, %cst_86 {dimension_numbers = #tpu.dot_dimension_numbers<[1], [0], [0], [1], [0, 0, 1, 1], [], []>} : vector<2x32xf32>, vector<32x128xf32>, vector<2x128xf32> -> vector<2x128xf32>
    %276 = arith.addf %62, %275 : vector<2x128xf32>
    %277 = vector.extract_strided_slice %276 {offsets = [0, 0], sizes = [2, 96], strides = [1, 1]} : vector<2x128xf32> to vector<2x96xf32>
    %278 = arith.negf %277 : vector<2x96xf32>
    %279 = math.exp %278 : vector<2x96xf32>
    %cst_87 = arith.constant 1.000000e+00 : f32
    %280 = vector.broadcast %cst_87 : f32 to vector<2x96xf32>
    %281 = arith.addf %280, %279 : vector<2x96xf32>
    %282 = arith.divf %280, %281 : vector<2x96xf32>
    %283 = vector.extract_strided_slice %276 {offsets = [0, 96], sizes = [2, 32], strides = [1, 1]} : vector<2x128xf32> to vector<2x32xf32>
    %284 = math.tanh %283 : vector<2x32xf32>
    %285 = vector.extract_strided_slice %282 {offsets = [0, 32], sizes = [2, 32], strides = [1, 1]} : vector<2x96xf32> to vector<2x32xf32>
    %286 = arith.mulf %285, %259 : vector<2x32xf32>
    %287 = vector.extract_strided_slice %282 {offsets = [0, 0], sizes = [2, 32], strides = [1, 1]} : vector<2x96xf32> to vector<2x32xf32>
    %288 = arith.mulf %287, %284 : vector<2x32xf32>
    %289 = arith.addf %286, %288 : vector<2x32xf32>
    %290 = vector.extract_strided_slice %282 {offsets = [0, 64], sizes = [2, 32], strides = [1, 1]} : vector<2x96xf32> to vector<2x32xf32>
    %291 = math.tanh %289 : vector<2x32xf32>
    %292 = arith.mulf %290, %291 : vector<2x32xf32>
    %293 = vector.extract_strided_slice %292 {offsets = [0, 0], sizes = [2, 16], strides = [1, 1]} : vector<2x32xf32> to vector<2x16xf32>
    %294 = vector.extract_strided_slice %292 {offsets = [0, 16], sizes = [2, 16], strides = [1, 1]} : vector<2x32xf32> to vector<2x16xf32>
    %295 = vector.extract_strided_slice %292 {offsets = [0, 0], sizes = [2, 16], strides = [1, 1]} : vector<2x32xf32> to vector<2x16xf32>
    %296 = vector.broadcast %5 : vector<1x16xf32> to vector<2x16xf32>
    %297 = arith.mulf %295, %296 : vector<2x16xf32>
    %cst_88 = arith.constant dense<0.000000e+00> : vector<2xf32>
    %298 = vector.multi_reduction <add>, %297, %cst_88 [1] : vector<2x16xf32> to vector<2xf32>
    %299 = vector.shape_cast %298 : vector<2xf32> to vector<2x1xf32>
    %300 = vector.extract_strided_slice %292 {offsets = [0, 16], sizes = [2, 16], strides = [1, 1]} : vector<2x32xf32> to vector<2x16xf32>
    %301 = vector.broadcast %6 : vector<1x16xf32> to vector<2x16xf32>
    %302 = arith.mulf %300, %301 : vector<2x16xf32>
    %cst_89 = arith.constant dense<0.000000e+00> : vector<2xf32>
    %303 = vector.multi_reduction <add>, %302, %cst_89 [1] : vector<2x16xf32> to vector<2xf32>
    %304 = vector.shape_cast %303 : vector<2xf32> to vector<2x1xf32>
    %305 = arith.addf %89, %304 : vector<2x1xf32>
    %306 = arith.addf %119, %274 : vector<2x1xf32>
    %307 = arith.addf %149, %244 : vector<2x1xf32>
    %308 = arith.addf %179, %214 : vector<2x1xf32>
    %309 = arith.addf %209, %184 : vector<2x1xf32>
    %310 = arith.addf %239, %154 : vector<2x1xf32>
    %311 = arith.addf %269, %124 : vector<2x1xf32>
    %312 = arith.addf %299, %94 : vector<2x1xf32>
    %313 = tpu.concatenate %305, %306, %307, %308, %309, %310, %311, %312 in 1 : vector<2x1xf32>, vector<2x1xf32>, vector<2x1xf32>, vector<2x1xf32>, vector<2x1xf32>, vector<2x1xf32>, vector<2x1xf32>, vector<2x1xf32> -> vector<2x8xf32>
    %cst_90 = arith.constant dense<0xFF800000> : vector<2xf32>
    %314 = vector.multi_reduction <maximumf>, %313, %cst_90 [1] : vector<2x8xf32> to vector<2xf32>
    %315 = vector.shape_cast %314 : vector<2xf32> to vector<2x1xf32>
    %316 = vector.broadcast %315 : vector<2x1xf32> to vector<2x8xf32>
    %317 = arith.subf %313, %316 : vector<2x8xf32>
    %318 = math.exp %317 : vector<2x8xf32>
    %cst_91 = arith.constant dense<0.000000e+00> : vector<2xf32>
    %319 = vector.multi_reduction <add>, %318, %cst_91 [1] : vector<2x8xf32> to vector<2xf32>
    %320 = vector.shape_cast %319 : vector<2xf32> to vector<2x1xf32>
    %321 = tpu.reciprocal %320 {approx = true} : vector<2x1xf32> -> vector<2x1xf32>
    %322 = vector.broadcast %321 : vector<2x1xf32> to vector<2x8xf32>
    %323 = arith.mulf %318, %322 : vector<2x8xf32>
    %c0_92 = arith.constant 0 : index
    %c0_93 = arith.constant 0 : index
    %324 = vector.load %arg7[%c0_92, %c0_93] : memref<2x8xf32, #tpu.memory_space<vmem>>, vector<2x8xf32>
    tpu.vector_store %arg7[%c0_92, %c0_93], %323 {strides = array<i32>} : memref<2x8xf32, #tpu.memory_space<vmem>>, vector<2x8xf32>,
    %cst_94 = arith.constant 0.000000e+00 : f32
    %325 = vector.broadcast %cst_94 : f32 to vector<2x16xf32>
    %cst_95 = arith.constant 0.000000e+00 : f32
    %326 = vector.broadcast %cst_95 : f32 to vector<2x16xf32>
    %327 = vector.extract_strided_slice %323 {offsets = [0, 0], sizes = [2, 1], strides = [1, 1]} : vector<2x8xf32> to vector<2x1xf32>
    %328 = vector.broadcast %327 : vector<2x1xf32> to vector<2x16xf32>
    %329 = arith.mulf %328, %83 : vector<2x16xf32>
    %330 = arith.addf %325, %329 : vector<2x16xf32>
    %331 = vector.broadcast %327 : vector<2x1xf32> to vector<2x16xf32>
    %332 = arith.mulf %331, %294 : vector<2x16xf32>
    %333 = arith.addf %326, %332 : vector<2x16xf32>
    %334 = vector.extract_strided_slice %323 {offsets = [0, 1], sizes = [2, 1], strides = [1, 1]} : vector<2x8xf32> to vector<2x1xf32>
    %335 = vector.broadcast %334 : vector<2x1xf32> to vector<2x16xf32>
    %336 = arith.mulf %335, %113 : vector<2x16xf32>
    %337 = arith.addf %330, %336 : vector<2x16xf32>
    %338 = vector.broadcast %334 : vector<2x1xf32> to vector<2x16xf32>
    %339 = arith.mulf %338, %264 : vector<2x16xf32>
    %340 = arith.addf %333, %339 : vector<2x16xf32>
    %341 = vector.extract_strided_slice %323 {offsets = [0, 2], sizes = [2, 1], strides = [1, 1]} : vector<2x8xf32> to vector<2x1xf32>
    %342 = vector.broadcast %341 : vector<2x1xf32> to vector<2x16xf32>
    %343 = arith.mulf %342, %143 : vector<2x16xf32>
    %344 = arith.addf %337, %343 : vector<2x16xf32>
    %345 = vector.broadcast %341 : vector<2x1xf32> to vector<2x16xf32>
    %346 = arith.mulf %345, %234 : vector<2x16xf32>
    %347 = arith.addf %340, %346 : vector<2x16xf32>
    %348 = vector.extract_strided_slice %323 {offsets = [0, 3], sizes = [2, 1], strides = [1, 1]} : vector<2x8xf32> to vector<2x1xf32>
    %349 = vector.broadcast %348 : vector<2x1xf32> to vector<2x16xf32>
    %350 = arith.mulf %349, %173 : vector<2x16xf32>
    %351 = arith.addf %344, %350 : vector<2x16xf32>
    %352 = vector.broadcast %348 : vector<2x1xf32> to vector<2x16xf32>
    %353 = arith.mulf %352, %204 : vector<2x16xf32>
    %354 = arith.addf %347, %353 : vector<2x16xf32>
    %355 = vector.extract_strided_slice %323 {offsets = [0, 4], sizes = [2, 1], strides = [1, 1]} : vector<2x8xf32> to vector<2x1xf32>
    %356 = vector.broadcast %355 : vector<2x1xf32> to vector<2x16xf32>
    %357 = arith.mulf %356, %203 : vector<2x16xf32>
    %358 = arith.addf %351, %357 : vector<2x16xf32>
    %359 = vector.broadcast %355 : vector<2x1xf32> to vector<2x16xf32>
    %360 = arith.mulf %359, %174 : vector<2x16xf32>
    %361 = arith.addf %354, %360 : vector<2x16xf32>
    %362 = vector.extract_strided_slice %323 {offsets = [0, 5], sizes = [2, 1], strides = [1, 1]} : vector<2x8xf32> to vector<2x1xf32>
    %363 = vector.broadcast %362 : vector<2x1xf32> to vector<2x16xf32>
    %364 = arith.mulf %363, %233 : vector<2x16xf32>
    %365 = arith.addf %358, %364 : vector<2x16xf32>
    %366 = vector.broadcast %362 : vector<2x1xf32> to vector<2x16xf32>
    %367 = arith.mulf %366, %144 : vector<2x16xf32>
    %368 = arith.addf %361, %367 : vector<2x16xf32>
    %369 = vector.extract_strided_slice %323 {offsets = [0, 6], sizes = [2, 1], strides = [1, 1]} : vector<2x8xf32> to vector<2x1xf32>
    %370 = vector.broadcast %369 : vector<2x1xf32> to vector<2x16xf32>
    %371 = arith.mulf %370, %263 : vector<2x16xf32>
    %372 = arith.addf %365, %371 : vector<2x16xf32>
    %373 = vector.broadcast %369 : vector<2x1xf32> to vector<2x16xf32>
    %374 = arith.mulf %373, %114 : vector<2x16xf32>
    %375 = arith.addf %368, %374 : vector<2x16xf32>
    %376 = vector.extract_strided_slice %323 {offsets = [0, 7], sizes = [2, 1], strides = [1, 1]} : vector<2x8xf32> to vector<2x1xf32>
    %377 = vector.broadcast %376 : vector<2x1xf32> to vector<2x16xf32>
    %378 = arith.mulf %377, %293 : vector<2x16xf32>
    %379 = arith.addf %372, %378 : vector<2x16xf32>
    %380 = vector.broadcast %376 : vector<2x1xf32> to vector<2x16xf32>
    %381 = arith.mulf %380, %84 : vector<2x16xf32>
    %382 = arith.addf %375, %381 : vector<2x16xf32>
    %383 = tpu.concatenate %379, %382 in 1 : vector<2x16xf32>, vector<2x16xf32> -> vector<2x32xf32>
    %c0_96 = arith.constant 0 : index
    %c0_97 = arith.constant 0 : index
    %384 = vector.load %arg6[%c0_96, %c0_97] : memref<2x32xf32, #tpu.memory_space<vmem>>, vector<2x32xf32>
    tpu.vector_store %arg6[%c0_96, %c0_97], %383 {strides = array<i32>} : memref<2x32xf32, #tpu.memory_space<vmem>>, vector<2x32xf32>,
    return
  }
  func.func @transform_0(%arg0: i32) -> (i32, i32, i32) {
    %c0_i32 = arith.constant 0 : i32
    %c0_i32_0 = arith.constant 0 : i32
    %c0_i32_1 = arith.constant 0 : i32
    return %c0_i32, %arg0, %c0_i32_0 : i32, i32, i32
  }
  func.func @transform_1(%arg0: i32) -> (i32, i32) {
    %c0_i32 = arith.constant 0 : i32
    %c0_i32_0 = arith.constant 0 : i32
    %c0_i32_1 = arith.constant 0 : i32
    return %c0_i32, %c0_i32_0 : i32, i32
  }
  func.func @transform_2(%arg0: i32) -> (i32, i32) {
    %c0_i32 = arith.constant 0 : i32
    %c0_i32_0 = arith.constant 0 : i32
    %c0_i32_1 = arith.constant 0 : i32
    return %c0_i32, %c0_i32_0 : i32, i32
  }
  func.func @transform_3(%arg0: i32) -> (i32, i32) {
    %c0_i32 = arith.constant 0 : i32
    %c0_i32_0 = arith.constant 0 : i32
    %c0_i32_1 = arith.constant 0 : i32
    return %c0_i32, %c0_i32_0 : i32, i32
  }
  func.func @transform_4(%arg0: i32) -> (i32, i32) {
    %c0_i32 = arith.constant 0 : i32
    %c0_i32_0 = arith.constant 0 : i32
    %c0_i32_1 = arith.constant 0 : i32
    return %c0_i32, %c0_i32_0 : i32, i32
  }
  func.func @transform_5(%arg0: i32) -> (i32, i32) {
    %c0_i32 = arith.constant 0 : i32
    %c0_i32_0 = arith.constant 0 : i32
    return %arg0, %c0_i32 : i32, i32
  }
  func.func @transform_6(%arg0: i32) -> (i32, i32) {
    %c0_i32 = arith.constant 0 : i32
    %c0_i32_0 = arith.constant 0 : i32
    return %arg0, %c0_i32 : i32, i32
  }
}

</mosaic_0001>

<llo_original>
// kernel: tpu_custom_call.1
$region0: #{tpu_custom_call.1}
  #allocation0 [shape = 'u32[]', space=smem, size = 0x4, offset = 0x4, fixed_abs, tag = 'smem constant byte address 0x4 - core index']
  #allocation1 [shape = 'u32[144,128]{1,0:T(1,128)}', space=vmem, size = 0x12000, scoped, tag = 'internal scratch']
  %s0 = inlined_call_operand.vmem [shape: f32[8,2,4], index: 0, kind: input, shape index: {}]
  %s1 = inlined_call_operand.vmem [shape: f32[8,128], index: 1, kind: input, shape index: {}]
  %s2 = inlined_call_operand.hbm [shape: f32[32,128], index: 2, kind: input, shape index: {}]
  %s3 = inlined_call_operand.vmem [shape: f32[1,128], index: 3, kind: input, shape index: {}]
  %s4 = inlined_call_operand.vmem [shape: f32[1,32], index: 4, kind: input, shape index: {}]
  %s5 = inlined_call_operand.hbm [shape: f32[2,32], index: 5, kind: output, shape index: {0}]
  %s6 = inlined_call_operand.hbm [shape: f32[2,8], index: 6, kind: output, shape index: {1}]
  %7 = xla_tuple %s5, %s6
  %s8 = sld [smem:[#allocation0]]
  $region42: #{tpu_custom_call.1} parent=0
    _
  %s10 = ssub.s32 1, %s8
  %s11 = scalar_select 0, %s10, %s8
  $region1: #{tpu_custom_call.1} parent=0
    #allocation2 [shape = 'u8[16384]{0}', space=vmem, size = 0x4000, scoped, tag = 'input window, operand 2, single buffered']
    #allocation3 [shape = 's32[1]{0}', space=sflag, size = 0x4, scoped, tag = 'scoped memory for tpu_custom_call.1']
    #allocation4 [shape = 's32[1]{0}', space=sflag, size = 0x4, scoped, tag = 'scoped memory for tpu_custom_call.1']
    #allocation5 [shape = 'u8[1024]{0}', space=vmem, size = 0x400, scoped, tag = 'output window, operand 0, single buffered']
    #allocation6 [shape = 'u8[1024]{0}', space=vmem, size = 0x400, scoped, tag = 'output window, operand 1, single buffered']
    #allocation7 [shape = 's32[1]{0}', space=sflag, size = 0x4, scoped, tag = 'scoped memory for tpu_custom_call.1']
    %12 = vsyncpa [#allocation3], 0
    %13 = vsyncpa [#allocation4], 0
    %14 = vsyncpa [#allocation7], 0
    // Predicated region
    $region2: #{tpu_custom_call.1} parent=1 // pred_check
      _
    $region3: #{tpu_custom_call.1} parent=1 // pred_check_branch
      %16 = sbr.rel (0) target = $region5
    $region4: #{tpu_custom_call.1} parent=1 // pred_region
      _
    $region5: #{tpu_custom_call.1} parent=1 // pred_fallthru
      _
    // Predicated region
    $region6: #{tpu_custom_call.1} parent=1 // pred_check
      _
    $region7: #{tpu_custom_call.1} parent=1 // pred_check_branch
      %18 = sbr.rel (0) target = $region9
    $region8: #{tpu_custom_call.1} parent=1 // pred_region
      _
    $region9: #{tpu_custom_call.1} parent=1 // pred_fallthru
      _
    // Predicated region
    $region10: #{tpu_custom_call.1} parent=1 // pred_check
      _
    $region11: #{tpu_custom_call.1} parent=1 // pred_check_branch
      %20 = sbr.rel (0) target = $region13
    $region12: #{tpu_custom_call.1} parent=1 // pred_region
      %s22 = ssub.s32 512, 512
      %23 = vsyncadd [#allocation3], %s22
      %s24 = sshll.u32 [#allocation2], 4
      %s25 = int_to_ptr.vmem [resolvable:$true] %s24
      %30 = dma.hbm_to_vmem [thread:$0]  %s2, 512, %s25, [#allocation3], 128, 128, 8
    $region13: #{tpu_custom_call.1} parent=1 // pred_fallthru
      _
    // Predicated region
    $region14: #{tpu_custom_call.1} parent=1 // pred_check
      _
    $region15: #{tpu_custom_call.1} parent=1 // pred_check_branch
      %32 = sbr.rel (0) target = $region17
    $region16: #{tpu_custom_call.1} parent=1 // pred_region
      _
    $region17: #{tpu_custom_call.1} parent=1 // pred_fallthru
      _
    // Predicated region
    $region18: #{tpu_custom_call.1} parent=1 // pred_check
      _
    $region19: #{tpu_custom_call.1} parent=1 // pred_check_branch
      %34 = sbr.rel (0) target = $region21
    $region20: #{tpu_custom_call.1} parent=1 // pred_region
      _
    $region21: #{tpu_custom_call.1} parent=1 // pred_fallthru
      _
    // Predicated region
    $region22: #{tpu_custom_call.1} parent=1 // pred_check
      _
    $region23: #{tpu_custom_call.1} parent=1 // pred_check_branch
      %36 = sbr.rel (0) target = $region25
    $region24: #{tpu_custom_call.1} parent=1 // pred_region
      %37 = dma.done [#allocation3], 512
    $region25: #{tpu_custom_call.1} parent=1 // pred_fallthru
      _
    %v38 = vld [vmem:[%s1] sm:$0xff]
    %v39 = vld [vmem:[#allocation2] sm:$0xff]
    %v40 = vld [vmem:[#allocation2 + $0x8] sm:$0xff]
    %v41 = vld [vmem:[#allocation2 + $0x10] sm:$0xff]
    %v42 = vld [vmem:[#allocation2 + $0x18] sm:$0xff]
    %v43 = vld [vmem:[%s3] sm:$0x1]
    %v45 = vlaneseq
    %v46 = vshrl.u32 %v45, 7
    %v47 = vsub.s32 0, %v46
    %v48 = vrot.slane %v43, %v47
    %v50 = vld [vmem:[%s4] sm:$0x1]
    %v51 = vld [vmem:[%s0] sm:$0x3]
    %s52 = scalar_lea.vmem %s0, 14
    %v53 = vld [vmem:[%s52] sm:$0x3]
    %55 = vrot.lane.b32.xlu0 %v53, 4
    %v56 = vpop.permute.xlu0 %55
    %vm58 = vcmask 31744
    %v59 = vsel %vm58, %v51, %v56
    %vm60 = vcmask 64512
    %v62 = vsel %vm60, %v59, 0
    %64 = vmatprep.subr.mxu0 0.0
    %65 = vmatpush1.msra.mxu0 %v38
    %66 = vmatprep.subr.mxu0 0.0
    %67 = vmatpush1.msra.mxu0 0.0
    %68 = vmatprep.subr.mxu0 0.0
    %69 = vmatpush1.msra.mxu0 0.0
    %70 = vmatprep.subr.mxu0 0.0
    %71 = vmatpush1.msra.mxu0 0.0
    %72 = vmatprep.subr.mxu0 0.0
    %73 = vmatpush1.msra.mxu0 0.0
    %74 = vmatprep.subr.mxu0 0.0
    %75 = vmatpush1.msra.mxu0 0.0
    %76 = vmatprep.subr.mxu0 0.0
    %77 = vmatpush1.msra.mxu0 0.0
    %78 = vmatprep.subr.mxu0 0.0
    %79 = vmatpush1.msra.mxu0 0.0
    %80 = vmatprep.subr.mxu0 0.0
    %81 = vmatpush1.msra.mxu0 0.0
    %82 = vmatprep.subr.mxu0 0.0
    %83 = vmatpush1.msra.mxu0 0.0
    %84 = vmatprep.subr.mxu0 0.0
    %85 = vmatpush1.msra.mxu0 0.0
    %86 = vmatprep.subr.mxu0 0.0
    %87 = vmatpush1.msra.mxu0 0.0
    %88 = vmatprep.subr.mxu0 0.0
    %89 = vmatpush1.msra.mxu0 0.0
    %90 = vmatprep.subr.mxu0 0.0
    %91 = vmatpush1.msra.mxu0 0.0
    %92 = vmatprep.subr.mxu0 0.0
    %93 = vmatpush1.msra.mxu0 0.0
    %94 = vmatprep.subr.mxu0 0.0
    %95 = vmatpush1.msra.mxu0 0.0
    %96 = vmatprep.subr.mxu0 0.0
    %97 = vmatpush1.msra.mxu0 0.0
    %98 = vmatprep.subr.mxu0 0.0
    %99 = vmatpush1.msra.mxu0 0.0
    %100 = vmatprep.subr.mxu0 0.0
    %101 = vmatpush1.msra.mxu0 0.0
    %102 = vmatprep.subr.mxu0 0.0
    %103 = vmatpush1.msra.mxu0 0.0
    %104 = vmatprep.subr.mxu0 0.0
    %105 = vmatpush1.msra.mxu0 0.0
    %106 = vmatprep.subr.mxu0 0.0
    %107 = vmatpush1.msra.mxu0 0.0
    %108 = vmatprep.subr.mxu0 0.0
    %109 = vmatpush1.msra.mxu0 0.0
    %110 = vmatprep.subr.mxu0 0.0
    %111 = vmatpush1.msra.mxu0 0.0
    %112 = vmatprep.subr.mxu0 0.0
    %113 = vmatpush1.msra.mxu0 0.0
    %114 = vmatprep.subr.mxu0 0.0
    %115 = vmatpush1.msra.mxu0 0.0
    %116 = vmatprep.subr.mxu0 0.0
    %117 = vmatpush1.msra.mxu0 0.0
    %118 = vmatprep.subr.mxu0 0.0
    %119 = vmatpush1.msra.mxu0 0.0
    %120 = vmatprep.subr.mxu0 0.0
    %121 = vmatpush1.msra.mxu0 0.0
    %122 = vmatprep.subr.mxu0 0.0
    %123 = vmatpush1.msra.mxu0 0.0
    %124 = vmatprep.subr.mxu0 0.0
    %125 = vmatpush1.msra.mxu0 0.0
    %126 = vmatprep.subr.mxu0 0.0
    %127 = vmatpush1.msra.mxu0 0.0
    %128 = vmatprep.mubr.f32.mxu0 0.0
    %129 = vmatmul.mubr.f32.gmra.mrb[0].mxu0 %v62
    %v130 = vpop.f32.mrb[0].mxu0
    %v131 = vadd.f32 %v48, %v130
    %v132 = vpop.f32.mrb[0].mxu0
    %133 = vdwg.mxu0
    %s134 = scalar_lea.vmem %s0, 2
    %v135 = vld [vmem:[%s134] sm:$0x3]
    %s136 = scalar_lea.vmem %s0, 12
    %v137 = vld [vmem:[%s136] sm:$0x3]
    %139 = vrot.lane.b32.xlu0 %v137, 4
    %v140 = vpop.permute.xlu0 %139
    %v142 = vsel %vm58, %v135, %v140
    %v144 = vsel %vm60, %v142, 0
    %146 = vmatprep.subr.mxu0 0.0
    %147 = vmatpush1.msra.mxu0 %v38
    %148 = vmatprep.subr.mxu0 0.0
    %149 = vmatpush1.msra.mxu0 0.0
    %150 = vmatprep.subr.mxu0 0.0
    %151 = vmatpush1.msra.mxu0 0.0
    %152 = vmatprep.subr.mxu0 0.0
    %153 = vmatpush1.msra.mxu0 0.0
    %154 = vmatprep.subr.mxu0 0.0
    %155 = vmatpush1.msra.mxu0 0.0
    %156 = vmatprep.subr.mxu0 0.0
    %157 = vmatpush1.msra.mxu0 0.0
    %158 = vmatprep.subr.mxu0 0.0
    %159 = vmatpush1.msra.mxu0 0.0
    %160 = vmatprep.subr.mxu0 0.0
    %161 = vmatpush1.msra.mxu0 0.0
    %162 = vmatprep.subr.mxu0 0.0
    %163 = vmatpush1.msra.mxu0 0.0
    %164 = vmatprep.subr.mxu0 0.0
    %165 = vmatpush1.msra.mxu0 0.0
    %166 = vmatprep.subr.mxu0 0.0
    %167 = vmatpush1.msra.mxu0 0.0
    %168 = vmatprep.subr.mxu0 0.0
    %169 = vmatpush1.msra.mxu0 0.0
    %170 = vmatprep.subr.mxu0 0.0
    %171 = vmatpush1.msra.mxu0 0.0
    %172 = vmatprep.subr.mxu0 0.0
    %173 = vmatpush1.msra.mxu0 0.0
    %174 = vmatprep.subr.mxu0 0.0
    %175 = vmatpush1.msra.mxu0 0.0
    %176 = vmatprep.subr.mxu0 0.0
    %177 = vmatpush1.msra.mxu0 0.0
    %178 = vmatprep.subr.mxu0 0.0
    %179 = vmatpush1.msra.mxu0 0.0
    %180 = vmatprep.subr.mxu0 0.0
    %181 = vmatpush1.msra.mxu0 0.0
    %182 = vmatprep.subr.mxu0 0.0
    %183 = vmatpush1.msra.mxu0 0.0
    %184 = vmatprep.subr.mxu0 0.0
    %185 = vmatpush1.msra.mxu0 0.0
    %186 = vmatprep.subr.mxu0 0.0
    %187 = vmatpush1.msra.mxu0 0.0
    %188 = vmatprep.subr.mxu0 0.0
    %189 = vmatpush1.msra.mxu0 0.0
    %190 = vmatprep.subr.mxu0 0.0
    %191 = vmatpush1.msra.mxu0 0.0
    %192 = vmatprep.subr.mxu0 0.0
    %193 = vmatpush1.msra.mxu0 0.0
    %194 = vmatprep.subr.mxu0 0.0
    %195 = vmatpush1.msra.mxu0 0.0
    %196 = vmatprep.subr.mxu0 0.0
    %197 = vmatpush1.msra.mxu0 0.0
    %198 = vmatprep.subr.mxu0 0.0
    %199 = vmatpush1.msra.mxu0 0.0
    %200 = vmatprep.subr.mxu0 0.0
    %201 = vmatpush1.msra.mxu0 0.0
    %202 = vmatprep.subr.mxu0 0.0
    %203 = vmatpush1.msra.mxu0 0.0
    %204 = vmatprep.subr.mxu0 0.0
    %205 = vmatpush1.msra.mxu0 0.0
    %206 = vmatprep.subr.mxu0 0.0
    %207 = vmatpush1.msra.mxu0 0.0
    %208 = vmatprep.subr.mxu0 0.0
    %209 = vmatpush1.msra.mxu0 0.0
    %210 = vmatprep.mubr.f32.mxu0 0.0
    %211 = vmatmul.mubr.f32.gmra.mrb[0].mxu0 %v144
    %v212 = vpop.f32.mrb[0].mxu0
    %v213 = vadd.f32 %v48, %v212
    %v214 = vpop.f32.mrb[0].mxu0
    %215 = vdwg.mxu0
    %s216 = scalar_lea.vmem %s0, 4
    %v217 = vld [vmem:[%s216] sm:$0x3]
    %s218 = scalar_lea.vmem %s0, 10
    %v219 = vld [vmem:[%s218] sm:$0x3]
    %221 = vrot.lane.b32.xlu0 %v219, 4
    %v222 = vpop.permute.xlu0 %221
    %v224 = vsel %vm58, %v217, %v222
    %v226 = vsel %vm60, %v224, 0
    %228 = vmatprep.subr.mxu0 0.0
    %229 = vmatpush1.msra.mxu0 %v38
    %230 = vmatprep.subr.mxu0 0.0
    %231 = vmatpush1.msra.mxu0 0.0
    %232 = vmatprep.subr.mxu0 0.0
    %233 = vmatpush1.msra.mxu0 0.0
    %234 = vmatprep.subr.mxu0 0.0
    %235 = vmatpush1.msra.mxu0 0.0
    %236 = vmatprep.subr.mxu0 0.0
    %237 = vmatpush1.msra.mxu0 0.0
    %238 = vmatprep.subr.mxu0 0.0
    %239 = vmatpush1.msra.mxu0 0.0
    %240 = vmatprep.subr.mxu0 0.0
    %241 = vmatpush1.msra.mxu0 0.0
    %242 = vmatprep.subr.mxu0 0.0
    %243 = vmatpush1.msra.mxu0 0.0
    %244 = vmatprep.subr.mxu0 0.0
    %245 = vmatpush1.msra.mxu0 0.0
    %246 = vmatprep.subr.mxu0 0.0
    %247 = vmatpush1.msra.mxu0 0.0
    %248 = vmatprep.subr.mxu0 0.0
    %249 = vmatpush1.msra.mxu0 0.0
    %250 = vmatprep.subr.mxu0 0.0
    %251 = vmatpush1.msra.mxu0 0.0
    %252 = vmatprep.subr.mxu0 0.0
    %253 = vmatpush1.msra.mxu0 0.0
    %254 = vmatprep.subr.mxu0 0.0
    %255 = vmatpush1.msra.mxu0 0.0
    %256 = vmatprep.subr.mxu0 0.0
    %257 = vmatpush1.msra.mxu0 0.0
    %258 = vmatprep.subr.mxu0 0.0
    %259 = vmatpush1.msra.mxu0 0.0
    %260 = vmatprep.subr.mxu0 0.0
    %261 = vmatpush1.msra.mxu0 0.0
    %262 = vmatprep.subr.mxu0 0.0
    %263 = vmatpush1.msra.mxu0 0.0
    %264 = vmatprep.subr.mxu0 0.0
    %265 = vmatpush1.msra.mxu0 0.0
    %266 = vmatprep.subr.mxu0 0.0
    %267 = vmatpush1.msra.mxu0 0.0
    %268 = vmatprep.subr.mxu0 0.0
    %269 = vmatpush1.msra.mxu0 0.0
    %270 = vmatprep.subr.mxu0 0.0
    %271 = vmatpush1.msra.mxu0 0.0
    %272 = vmatprep.subr.mxu0 0.0
    %273 = vmatpush1.msra.mxu0 0.0
    %274 = vmatprep.subr.mxu0 0.0
    %275 = vmatpush1.msra.mxu0 0.0
    %276 = vmatprep.subr.mxu0 0.0
    %277 = vmatpush1.msra.mxu0 0.0
    %278 = vmatprep.subr.mxu0 0.0
    %279 = vmatpush1.msra.mxu0 0.0
    %280 = vmatprep.subr.mxu0 0.0
    %281 = vmatpush1.msra.mxu0 0.0
    %282 = vmatprep.subr.mxu0 0.0
    %283 = vmatpush1.msra.mxu0 0.0
    %284 = vmatprep.subr.mxu0 0.0
    %285 = vmatpush1.msra.mxu0 0.0
    %286 = vmatprep.subr.mxu0 0.0
    %287 = vmatpush1.msra.mxu0 0.0
    %288 = vmatprep.subr.mxu0 0.0
    %289 = vmatpush1.msra.mxu0 0.0
    %290 = vmatprep.subr.mxu0 0.0
    %291 = vmatpush1.msra.mxu0 0.0
    %292 = vmatprep.mubr.f32.mxu0 0.0
    %293 = vmatmul.mubr.f32.gmra.mrb[0].mxu0 %v226
    %v294 = vpop.f32.mrb[0].mxu0
    %v295 = vadd.f32 %v48, %v294
    %v296 = vpop.f32.mrb[0].mxu0
    %297 = vdwg.mxu0
    %s298 = scalar_lea.vmem %s0, 6
    %v299 = vld [vmem:[%s298] sm:$0x3]
    %s300 = scalar_lea.vmem %s0, 8
    %v301 = vld [vmem:[%s300] sm:$0x3]
    %303 = vrot.lane.b32.xlu0 %v301, 4
    %v304 = vpop.permute.xlu0 %303
    %v306 = vsel %vm58, %v299, %v304
    %v308 = vsel %vm60, %v306, 0
    %310 = vmatprep.subr.mxu0 0.0
    %311 = vmatpush1.msra.mxu0 %v38
    %312 = vmatprep.subr.mxu0 0.0
    %313 = vmatpush1.msra.mxu0 0.0
    %314 = vmatprep.subr.mxu0 0.0
    %315 = vmatpush1.msra.mxu0 0.0
    %316 = vmatprep.subr.mxu0 0.0
    %317 = vmatpush1.msra.mxu0 0.0
    %318 = vmatprep.subr.mxu0 0.0
    %319 = vmatpush1.msra.mxu0 0.0
    %320 = vmatprep.subr.mxu0 0.0
    %321 = vmatpush1.msra.mxu0 0.0
    %322 = vmatprep.subr.mxu0 0.0
    %323 = vmatpush1.msra.mxu0 0.0
    %324 = vmatprep.subr.mxu0 0.0
    %325 = vmatpush1.msra.mxu0 0.0
    %326 = vmatprep.subr.mxu0 0.0
    %327 = vmatpush1.msra.mxu0 0.0
    %328 = vmatprep.subr.mxu0 0.0
    %329 = vmatpush1.msra.mxu0 0.0
    %330 = vmatprep.subr.mxu0 0.0
    %331 = vmatpush1.msra.mxu0 0.0
    %332 = vmatprep.subr.mxu0 0.0
    %333 = vmatpush1.msra.mxu0 0.0
    %334 = vmatprep.subr.mxu0 0.0
    %335 = vmatpush1.msra.mxu0 0.0
    %336 = vmatprep.subr.mxu0 0.0
    %337 = vmatpush1.msra.mxu0 0.0
    %338 = vmatprep.subr.mxu0 0.0
    %339 = vmatpush1.msra.mxu0 0.0
    %340 = vmatprep.subr.mxu0 0.0
    %341 = vmatpush1.msra.mxu0 0.0
    %342 = vmatprep.subr.mxu0 0.0
    %343 = vmatpush1.msra.mxu0 0.0
    %344 = vmatprep.subr.mxu0 0.0
    %345 = vmatpush1.msra.mxu0 0.0
    %346 = vmatprep.subr.mxu0 0.0
    %347 = vmatpush1.msra.mxu0 0.0
    %348 = vmatprep.subr.mxu0 0.0
    %349 = vmatpush1.msra.mxu0 0.0
    %350 = vmatprep.subr.mxu0 0.0
    %351 = vmatpush1.msra.mxu0 0.0
    %352 = vmatprep.subr.mxu0 0.0
    %353 = vmatpush1.msra.mxu0 0.0
    %354 = vmatprep.subr.mxu0 0.0
    %355 = vmatpush1.msra.mxu0 0.0
    %356 = vmatprep.subr.mxu0 0.0
    %357 = vmatpush1.msra.mxu0 0.0
    %358 = vmatprep.subr.mxu0 0.0
    %359 = vmatpush1.msra.mxu0 0.0
    %360 = vmatprep.subr.mxu0 0.0
    %361 = vmatpush1.msra.mxu0 0.0
    %362 = vmatprep.subr.mxu0 0.0
    %363 = vmatpush1.msra.mxu0 0.0
    %364 = vmatprep.subr.mxu0 0.0
    %365 = vmatpush1.msra.mxu0 0.0
    %366 = vmatprep.subr.mxu0 0.0
    %367 = vmatpush1.msra.mxu0 0.0
    %368 = vmatprep.subr.mxu0 0.0
    %369 = vmatpush1.msra.mxu0 0.0
    %370 = vmatprep.subr.mxu0 0.0
    %371 = vmatpush1.msra.mxu0 0.0
    %372 = vmatprep.subr.mxu0 0.0
    %373 = vmatpush1.msra.mxu0 0.0
    %374 = vmatprep.mubr.f32.mxu0 0.0
    %375 = vmatmul.mubr.f32.gmra.mrb[0].mxu0 %v308
    %v376 = vpop.f32.mrb[0].mxu0
    %v377 = vadd.f32 %v48, %v376
    %v378 = vpop.f32.mrb[0].mxu0
    %379 = vdwg.mxu0
    %381 = vrot.lane.b32.xlu0 %v299, 4
    %v382 = vpop.permute.xlu0 %381
    %v384 = vsel %vm58, %v301, %v382
    %v386 = vsel %vm60, %v384, 0
    %388 = vmatprep.subr.mxu0 0.0
    %389 = vmatpush1.msra.mxu0 %v38
    %390 = vmatprep.subr.mxu0 0.0
    %391 = vmatpush1.msra.mxu0 0.0
    %392 = vmatprep.subr.mxu0 0.0
    %393 = vmatpush1.msra.mxu0 0.0
    %394 = vmatprep.subr.mxu0 0.0
    %395 = vmatpush1.msra.mxu0 0.0
    %396 = vmatprep.subr.mxu0 0.0
    %397 = vmatpush1.msra.mxu0 0.0
    %398 = vmatprep.subr.mxu0 0.0
    %399 = vmatpush1.msra.mxu0 0.0
    %400 = vmatprep.subr.mxu0 0.0
    %401 = vmatpush1.msra.mxu0 0.0
    %402 = vmatprep.subr.mxu0 0.0
    %403 = vmatpush1.msra.mxu0 0.0
    %404 = vmatprep.subr.mxu0 0.0
    %405 = vmatpush1.msra.mxu0 0.0
    %406 = vmatprep.subr.mxu0 0.0
    %407 = vmatpush1.msra.mxu0 0.0
    %408 = vmatprep.subr.mxu0 0.0
    %409 = vmatpush1.msra.mxu0 0.0
    %410 = vmatprep.subr.mxu0 0.0
    %411 = vmatpush1.msra.mxu0 0.0
    %412 = vmatprep.subr.mxu0 0.0
    %413 = vmatpush1.msra.mxu0 0.0
    %414 = vmatprep.subr.mxu0 0.0
    %415 = vmatpush1.msra.mxu0 0.0
    %416 = vmatprep.subr.mxu0 0.0
    %417 = vmatpush1.msra.mxu0 0.0
    %418 = vmatprep.subr.mxu0 0.0
    %419 = vmatpush1.msra.mxu0 0.0
    %420 = vmatprep.subr.mxu0 0.0
    %421 = vmatpush1.msra.mxu0 0.0
    %422 = vmatprep.subr.mxu0 0.0
    %423 = vmatpush1.msra.mxu0 0.0
    %424 = vmatprep.subr.mxu0 0.0
    %425 = vmatpush1.msra.mxu0 0.0
    %426 = vmatprep.subr.mxu0 0.0
    %427 = vmatpush1.msra.mxu0 0.0
    %428 = vmatprep.subr.mxu0 0.0
    %429 = vmatpush1.msra.mxu0 0.0
    %430 = vmatprep.subr.mxu0 0.0
    %431 = vmatpush1.msra.mxu0 0.0
    %432 = vmatprep.subr.mxu0 0.0
    %433 = vmatpush1.msra.mxu0 0.0
    %434 = vmatprep.subr.mxu0 0.0
    %435 = vmatpush1.msra.mxu0 0.0
    %436 = vmatprep.subr.mxu0 0.0
    %437 = vmatpush1.msra.mxu0 0.0
    %438 = vmatprep.subr.mxu0 0.0
    %439 = vmatpush1.msra.mxu0 0.0
    %440 = vmatprep.subr.mxu0 0.0
    %441 = vmatpush1.msra.mxu0 0.0
    %442 = vmatprep.subr.mxu0 0.0
    %443 = vmatpush1.msra.mxu0 0.0
    %444 = vmatprep.subr.mxu0 0.0
    %445 = vmatpush1.msra.mxu0 0.0
    %446 = vmatprep.subr.mxu0 0.0
    %447 = vmatpush1.msra.mxu0 0.0
    %448 = vmatprep.subr.mxu0 0.0
    %449 = vmatpush1.msra.mxu0 0.0
    %450 = vmatprep.subr.mxu0 0.0
    %451 = vmatpush1.msra.mxu0 0.0
    %452 = vmatprep.mubr.f32.mxu0 0.0
    %453 = vmatmul.mubr.f32.gmra.mrb[0].mxu0 %v386
    %v454 = vpop.f32.mrb[0].mxu0
    %v455 = vadd.f32 %v48, %v454
    %v456 = vpop.f32.mrb[0].mxu0
    %457 = vdwg.mxu0
    %459 = vrot.lane.b32.xlu0 %v217, 4
    %v460 = vpop.permute.xlu0 %459
    %v462 = vsel %vm58, %v219, %v460
    %v464 = vsel %vm60, %v462, 0
    %466 = vmatprep.subr.mxu0 0.0
    %467 = vmatpush1.msra.mxu0 %v38
    %468 = vmatprep.subr.mxu0 0.0
    %469 = vmatpush1.msra.mxu0 0.0
    %470 = vmatprep.subr.mxu0 0.0
    %471 = vmatpush1.msra.mxu0 0.0
    %472 = vmatprep.subr.mxu0 0.0
    %473 = vmatpush1.msra.mxu0 0.0
    %474 = vmatprep.subr.mxu0 0.0
    %475 = vmatpush1.msra.mxu0 0.0
    %476 = vmatprep.subr.mxu0 0.0
    %477 = vmatpush1.msra.mxu0 0.0
    %478 = vmatprep.subr.mxu0 0.0
    %479 = vmatpush1.msra.mxu0 0.0
    %480 = vmatprep.subr.mxu0 0.0
    %481 = vmatpush1.msra.mxu0 0.0
    %482 = vmatprep.subr.mxu0 0.0
    %483 = vmatpush1.msra.mxu0 0.0
    %484 = vmatprep.subr.mxu0 0.0
    %485 = vmatpush1.msra.mxu0 0.0
    %486 = vmatprep.subr.mxu0 0.0
    %487 = vmatpush1.msra.mxu0 0.0
    %488 = vmatprep.subr.mxu0 0.0
    %489 = vmatpush1.msra.mxu0 0.0
    %490 = vmatprep.subr.mxu0 0.0
    %491 = vmatpush1.msra.mxu0 0.0
    %492 = vmatprep.subr.mxu0 0.0
    %493 = vmatpush1.msra.mxu0 0.0
    %494 = vmatprep.subr.mxu0 0.0
    %495 = vmatpush1.msra.mxu0 0.0
    %496 = vmatprep.subr.mxu0 0.0
    %497 = vmatpush1.msra.mxu0 0.0
    %498 = vmatprep.subr.mxu0 0.0
    %499 = vmatpush1.msra.mxu0 0.0
    %500 = vmatprep.subr.mxu0 0.0
    %501 = vmatpush1.msra.mxu0 0.0
    %502 = vmatprep.subr.mxu0 0.0
    %503 = vmatpush1.msra.mxu0 0.0
    %504 = vmatprep.subr.mxu0 0.0
    %505 = vmatpush1.msra.mxu0 0.0
    %506 = vmatprep.subr.mxu0 0.0
    %507 = vmatpush1.msra.mxu0 0.0
    %508 = vmatprep.subr.mxu0 0.0
    %509 = vmatpush1.msra.mxu0 0.0
    %510 = vmatprep.subr.mxu0 0.0
    %511 = vmatpush1.msra.mxu0 0.0
    %512 = vmatprep.subr.mxu0 0.0
    %513 = vmatpush1.msra.mxu0 0.0
    %514 = vmatprep.subr.mxu0 0.0
    %515 = vmatpush1.msra.mxu0 0.0
    %516 = vmatprep.subr.mxu0 0.0
    %517 = vmatpush1.msra.mxu0 0.0
    %518 = vmatprep.subr.mxu0 0.0
    %519 = vmatpush1.msra.mxu0 0.0
    %520 = vmatprep.subr.mxu0 0.0
    %521 = vmatpush1.msra.mxu0 0.0
    %522 = vmatprep.subr.mxu0 0.0
    %523 = vmatpush1.msra.mxu0 0.0
    %524 = vmatprep.subr.mxu0 0.0
    %525 = vmatpush1.msra.mxu0 0.0
    %526 = vmatprep.subr.mxu0 0.0
    %527 = vmatpush1.msra.mxu0 0.0
    %528 = vmatprep.subr.mxu0 0.0
    %529 = vmatpush1.msra.mxu0 0.0
    %530 = vmatprep.mubr.f32.mxu0 0.0
    %531 = vmatmul.mubr.f32.gmra.mrb[0].mxu0 %v464
    %v532 = vpop.f32.mrb[0].mxu0
    %v533 = vadd.f32 %v48, %v532
    %v534 = vpop.f32.mrb[0].mxu0
    %535 = vdwg.mxu0
    %537 = vrot.lane.b32.xlu0 %v135, 4
    %v538 = vpop.permute.xlu0 %537
    %v540 = vsel %vm58, %v137, %v538
    %v542 = vsel %vm60, %v540, 0
    %544 = vmatprep.subr.mxu0 0.0
    %545 = vmatpush1.msra.mxu0 %v38
    %546 = vmatprep.subr.mxu0 0.0
    %547 = vmatpush1.msra.mxu0 0.0
    %548 = vmatprep.subr.mxu0 0.0
    %549 = vmatpush1.msra.mxu0 0.0
    %550 = vmatprep.subr.mxu0 0.0
    %551 = vmatpush1.msra.mxu0 0.0
    %552 = vmatprep.subr.mxu0 0.0
    %553 = vmatpush1.msra.mxu0 0.0
    %554 = vmatprep.subr.mxu0 0.0
    %555 = vmatpush1.msra.mxu0 0.0
    %556 = vmatprep.subr.mxu0 0.0
    %557 = vmatpush1.msra.mxu0 0.0
    %558 = vmatprep.subr.mxu0 0.0
    %559 = vmatpush1.msra.mxu0 0.0
    %560 = vmatprep.subr.mxu0 0.0
    %561 = vmatpush1.msra.mxu0 0.0
    %562 = vmatprep.subr.mxu0 0.0
    %563 = vmatpush1.msra.mxu0 0.0
    %564 = vmatprep.subr.mxu0 0.0
    %565 = vmatpush1.msra.mxu0 0.0
    %566 = vmatprep.subr.mxu0 0.0
    %567 = vmatpush1.msra.mxu0 0.0
    %568 = vmatprep.subr.mxu0 0.0
    %569 = vmatpush1.msra.mxu0 0.0
    %570 = vmatprep.subr.mxu0 0.0
    %571 = vmatpush1.msra.mxu0 0.0
    %572 = vmatprep.subr.mxu0 0.0
    %573 = vmatpush1.msra.mxu0 0.0
    %574 = vmatprep.subr.mxu0 0.0
    %575 = vmatpush1.msra.mxu0 0.0
    %576 = vmatprep.subr.mxu0 0.0
    %577 = vmatpush1.msra.mxu0 0.0
    %578 = vmatprep.subr.mxu0 0.0
    %579 = vmatpush1.msra.mxu0 0.0
    %580 = vmatprep.subr.mxu0 0.0
    %581 = vmatpush1.msra.mxu0 0.0
    %582 = vmatprep.subr.mxu0 0.0
    %583 = vmatpush1.msra.mxu0 0.0
    %584 = vmatprep.subr.mxu0 0.0
    %585 = vmatpush1.msra.mxu0 0.0
    %586 = vmatprep.subr.mxu0 0.0
    %587 = vmatpush1.msra.mxu0 0.0
    %588 = vmatprep.subr.mxu0 0.0
    %589 = vmatpush1.msra.mxu0 0.0
    %590 = vmatprep.subr.mxu0 0.0
    %591 = vmatpush1.msra.mxu0 0.0
    %592 = vmatprep.subr.mxu0 0.0
    %593 = vmatpush1.msra.mxu0 0.0
    %594 = vmatprep.subr.mxu0 0.0
    %595 = vmatpush1.msra.mxu0 0.0
    %596 = vmatprep.subr.mxu0 0.0
    %597 = vmatpush1.msra.mxu0 0.0
    %598 = vmatprep.subr.mxu0 0.0
    %599 = vmatpush1.msra.mxu0 0.0
    %600 = vmatprep.subr.mxu0 0.0
    %601 = vmatpush1.msra.mxu0 0.0
    %602 = vmatprep.subr.mxu0 0.0
    %603 = vmatpush1.msra.mxu0 0.0
    %604 = vmatprep.subr.mxu0 0.0
    %605 = vmatpush1.msra.mxu0 0.0
    %606 = vmatprep.subr.mxu0 0.0
    %607 = vmatpush1.msra.mxu0 0.0
    %608 = vmatprep.mubr.f32.mxu0 0.0
    %609 = vmatmul.mubr.f32.gmra.mrb[0].mxu0 %v542
    %v610 = vpop.f32.mrb[0].mxu0
    %v611 = vadd.f32 %v48, %v610
    %v612 = vpop.f32.mrb[0].mxu0
    %613 = vdwg.mxu0
    %615 = vrot.lane.b32.xlu0 %v51, 4
    %v616 = vpop.permute.xlu0 %615
    %v618 = vsel %vm58, %v53, %v616
    %v620 = vsel %vm60, %v618, 0
    %622 = vmatprep.subr.mxu0 0.0
    %623 = vmatpush1.msra.mxu0 %v38
    %624 = vmatprep.subr.mxu0 0.0
    %625 = vmatpush1.msra.mxu0 0.0
    %626 = vmatprep.subr.mxu0 0.0
    %627 = vmatpush1.msra.mxu0 0.0
    %628 = vmatprep.subr.mxu0 0.0
    %629 = vmatpush1.msra.mxu0 0.0
    %630 = vmatprep.subr.mxu0 0.0
    %631 = vmatpush1.msra.mxu0 0.0
    %632 = vmatprep.subr.mxu0 0.0
    %633 = vmatpush1.msra.mxu0 0.0
    %634 = vmatprep.subr.mxu0 0.0
    %635 = vmatpush1.msra.mxu0 0.0
    %636 = vmatprep.subr.mxu0 0.0
    %637 = vmatpush1.msra.mxu0 0.0
    %638 = vmatprep.subr.mxu0 0.0
    %639 = vmatpush1.msra.mxu0 0.0
    %640 = vmatprep.subr.mxu0 0.0
    %641 = vmatpush1.msra.mxu0 0.0
    %642 = vmatprep.subr.mxu0 0.0
    %643 = vmatpush1.msra.mxu0 0.0
    %644 = vmatprep.subr.mxu0 0.0
    %645 = vmatpush1.msra.mxu0 0.0
    %646 = vmatprep.subr.mxu0 0.0
    %647 = vmatpush1.msra.mxu0 0.0
    %648 = vmatprep.subr.mxu0 0.0
    %649 = vmatpush1.msra.mxu0 0.0
    %650 = vmatprep.subr.mxu0 0.0
    %651 = vmatpush1.msra.mxu0 0.0
    %652 = vmatprep.subr.mxu0 0.0
    %653 = vmatpush1.msra.mxu0 0.0
    %654 = vmatprep.subr.mxu0 0.0
    %655 = vmatpush1.msra.mxu0 0.0
    %656 = vmatprep.subr.mxu0 0.0
    %657 = vmatpush1.msra.mxu0 0.0
    %658 = vmatprep.subr.mxu0 0.0
    %659 = vmatpush1.msra.mxu0 0.0
    %660 = vmatprep.subr.mxu0 0.0
    %661 = vmatpush1.msra.mxu0 0.0
    %662 = vmatprep.subr.mxu0 0.0
    %663 = vmatpush1.msra.mxu0 0.0
    %664 = vmatprep.subr.mxu0 0.0
    %665 = vmatpush1.msra.mxu0 0.0
    %666 = vmatprep.subr.mxu0 0.0
    %667 = vmatpush1.msra.mxu0 0.0
    %668 = vmatprep.subr.mxu0 0.0
    %669 = vmatpush1.msra.mxu0 0.0
    %670 = vmatprep.subr.mxu0 0.0
    %671 = vmatpush1.msra.mxu0 0.0
    %672 = vmatprep.subr.mxu0 0.0
    %673 = vmatpush1.msra.mxu0 0.0
    %674 = vmatprep.subr.mxu0 0.0
    %675 = vmatpush1.msra.mxu0 0.0
    %676 = vmatprep.subr.mxu0 0.0
    %677 = vmatpush1.msra.mxu0 0.0
    %678 = vmatprep.subr.mxu0 0.0
    %679 = vmatpush1.msra.mxu0 0.0
    %680 = vmatprep.subr.mxu0 0.0
    %681 = vmatpush1.msra.mxu0 0.0
    %682 = vmatprep.subr.mxu0 0.0
    %683 = vmatpush1.msra.mxu0 0.0
    %684 = vmatprep.subr.mxu0 0.0
    %685 = vmatpush1.msra.mxu0 0.0
    %686 = vmatprep.mubr.f32.mxu0 0.0
    %687 = vmatmul.mubr.f32.gmra.mrb[0].mxu0 %v620
    %v688 = vpop.f32.mrb[0].mxu0
    %v689 = vadd.f32 %v48, %v688
    %v690 = vpop.f32.mrb[0].mxu0
    %691 = vdwg.mxu0
    %vm692 = vcmask 261120
    %v694 = vsel %vm692, 0.0, 0
    %696 = vmatprep.subr.mxu0 0.0
    %697 = vmatpush1.msra.mxu0 %v39
    %698 = vmatprep.subr.mxu0 0.0
    %699 = vmatpush1.msra.mxu0 %v40
    %700 = vmatprep.subr.mxu0 0.0
    %701 = vmatpush1.msra.mxu0 %v41
    %702 = vmatprep.subr.mxu0 0.0
    %703 = vmatpush1.msra.mxu0 %v42
    %704 = vmatprep.subr.mxu0 0.0
    %705 = vmatpush1.msra.mxu0 0.0
    %706 = vmatprep.subr.mxu0 0.0
    %707 = vmatpush1.msra.mxu0 0.0
    %708 = vmatprep.subr.mxu0 0.0
    %709 = vmatpush1.msra.mxu0 0.0
    %710 = vmatprep.subr.mxu0 0.0
    %711 = vmatpush1.msra.mxu0 0.0
    %712 = vmatprep.subr.mxu0 0.0
    %713 = vmatpush1.msra.mxu0 0.0
    %714 = vmatprep.subr.mxu0 0.0
    %715 = vmatpush1.msra.mxu0 0.0
    %716 = vmatprep.subr.mxu0 0.0
    %717 = vmatpush1.msra.mxu0 0.0
    %718 = vmatprep.subr.mxu0 0.0
    %719 = vmatpush1.msra.mxu0 0.0
    %720 = vmatprep.subr.mxu0 0.0
    %721 = vmatpush1.msra.mxu0 0.0
    %722 = vmatprep.subr.mxu0 0.0
    %723 = vmatpush1.msra.mxu0 0.0
    %724 = vmatprep.subr.mxu0 0.0
    %725 = vmatpush1.msra.mxu0 0.0
    %726 = vmatprep.subr.mxu0 0.0
    %727 = vmatpush1.msra.mxu0 0.0
    %728 = vmatprep.subr.mxu0 0.0
    %729 = vmatpush1.msra.mxu0 0.0
    %730 = vmatprep.subr.mxu0 0.0
    %731 = vmatpush1.msra.mxu0 0.0
    %732 = vmatprep.subr.mxu0 0.0
    %733 = vmatpush1.msra.mxu0 0.0
    %734 = vmatprep.subr.mxu0 0.0
    %735 = vmatpush1.msra.mxu0 0.0
    %736 = vmatprep.subr.mxu0 0.0
    %737 = vmatpush1.msra.mxu0 0.0
    %738 = vmatprep.subr.mxu0 0.0
    %739 = vmatpush1.msra.mxu0 0.0
    %740 = vmatprep.subr.mxu0 0.0
    %741 = vmatpush1.msra.mxu0 0.0
    %742 = vmatprep.subr.mxu0 0.0
    %743 = vmatpush1.msra.mxu0 0.0
    %744 = vmatprep.subr.mxu0 0.0
    %745 = vmatpush1.msra.mxu0 0.0
    %746 = vmatprep.subr.mxu0 0.0
    %747 = vmatpush1.msra.mxu0 0.0
    %748 = vmatprep.subr.mxu0 0.0
    %749 = vmatpush1.msra.mxu0 0.0
    %750 = vmatprep.subr.mxu0 0.0
    %751 = vmatpush1.msra.mxu0 0.0
    %752 = vmatprep.subr.mxu0 0.0
    %753 = vmatpush1.msra.mxu0 0.0
    %754 = vmatprep.subr.mxu0 0.0
    %755 = vmatpush1.msra.mxu0 0.0
    %756 = vmatprep.subr.mxu0 0.0
    %757 = vmatpush1.msra.mxu0 0.0
    %758 = vmatprep.subr.mxu0 0.0
    %759 = vmatpush1.msra.mxu0 0.0
    %760 = vmatprep.mubr.f32.mxu0 0.0
    %761 = vmatmul.mubr.f32.gmra.mrb[0].mxu0 %v694
    %v762 = vpop.f32.mrb[0].mxu0
    %v763 = vadd.f32 0.0, %v762
    %v764 = vpop.f32.mrb[0].mxu0
    %765 = vdwg.mxu0
    %v766 = vadd.f32 %v131, %v763
    %v767 = vxor.u32 %v766, 2147483648
    %v768 = vmul.f32 %v767, 1.442695
    %v769 = vpow.pop %v768
    %v770 = vadd.f32 %v769, 1.0
    %v771 = vrcp.pop %v770
    %v772 = vmul.f32 1.0, %v771
    %v773 = vtanh.pop %v766
    %v774 = vmul.f32 %v772, 0.0
    %776 = vrot.lane.b32.xlu0 %v773, 32
    %v777 = vpop.permute.xlu0 %776
    %v779 = vmul.f32 %v772, %v777
    %781 = vrot.lane.b32.xlu0 %v779, 32
    %v782 = vpop.permute.xlu0 %781
    %v784 = vadd.f32 %v774, %v782
    %v785 = vtanh.pop %v784
    %787 = vrot.lane.b32.xlu0 %v785, 32
    %v788 = vpop.permute.xlu0 %787
    %v790 = vmul.f32 %v772, %v788
    %v792 = vlaneseq
    %v793 = vshrl.u32 %v792, 7
    %v794 = vsub.s32 0, %v793
    %v795 = vrot.slane %v50, %v794
    %796 = vrot.lane.b32.xlu0 %v795, 64
    %v797 = vpop.permute.xlu0 %796
    %v799 = vmul.f32 %v790, %v797
    %801 = vrot.lane.b32.xlu0 %v799, 64
    %v802 = vpop.permute.xlu0 %801
    %vm804 = vcmask 123904
    %v805 = vsel %vm804, %v802, 0.0
    %806 = vadd.xlane.f32.xlu0 %v805
    %v807 = vpop.xlane.xlu0 %806
    %808 = vrot.lane.b32.xlu0 %v799, 48
    %v809 = vpop.permute.xlu0 %808
    %v811 = vsel %vm804, %v809, 0.0
    %812 = vadd.xlane.f32.xlu0 %v811
    %v813 = vpop.xlane.xlu0 %812
    %815 = vrot.lane.b32.xlu0 %v790, 64
    %v816 = vpop.permute.xlu0 %815
    %v817 = vsel %vm692, %v816, 0
    %819 = vmatprep.subr.mxu0 0.0
    %820 = vmatpush1.msra.mxu0 %v39
    %821 = vmatprep.subr.mxu0 0.0
    %822 = vmatpush1.msra.mxu0 %v40
    %823 = vmatprep.subr.mxu0 0.0
    %824 = vmatpush1.msra.mxu0 %v41
    %825 = vmatprep.subr.mxu0 0.0
    %826 = vmatpush1.msra.mxu0 %v42
    %827 = vmatprep.subr.mxu0 0.0
    %828 = vmatpush1.msra.mxu0 0.0
    %829 = vmatprep.subr.mxu0 0.0
    %830 = vmatpush1.msra.mxu0 0.0
    %831 = vmatprep.subr.mxu0 0.0
    %832 = vmatpush1.msra.mxu0 0.0
    %833 = vmatprep.subr.mxu0 0.0
    %834 = vmatpush1.msra.mxu0 0.0
    %835 = vmatprep.subr.mxu0 0.0
    %836 = vmatpush1.msra.mxu0 0.0
    %837 = vmatprep.subr.mxu0 0.0
    %838 = vmatpush1.msra.mxu0 0.0
    %839 = vmatprep.subr.mxu0 0.0
    %840 = vmatpush1.msra.mxu0 0.0
    %841 = vmatprep.subr.mxu0 0.0
    %842 = vmatpush1.msra.mxu0 0.0
    %843 = vmatprep.subr.mxu0 0.0
    %844 = vmatpush1.msra.mxu0 0.0
    %845 = vmatprep.subr.mxu0 0.0
    %846 = vmatpush1.msra.mxu0 0.0
    %847 = vmatprep.subr.mxu0 0.0
    %848 = vmatpush1.msra.mxu0 0.0
    %849 = vmatprep.subr.mxu0 0.0
    %850 = vmatpush1.msra.mxu0 0.0
    %851 = vmatprep.subr.mxu0 0.0
    %852 = vmatpush1.msra.mxu0 0.0
    %853 = vmatprep.subr.mxu0 0.0
    %854 = vmatpush1.msra.mxu0 0.0
    %855 = vmatprep.subr.mxu0 0.0
    %856 = vmatpush1.msra.mxu0 0.0
    %857 = vmatprep.subr.mxu0 0.0
    %858 = vmatpush1.msra.mxu0 0.0
    %859 = vmatprep.subr.mxu0 0.0
    %860 = vmatpush1.msra.mxu0 0.0
    %861 = vmatprep.subr.mxu0 0.0
    %862 = vmatpush1.msra.mxu0 0.0
    %863 = vmatprep.subr.mxu0 0.0
    %864 = vmatpush1.msra.mxu0 0.0
    %865 = vmatprep.subr.mxu0 0.0
    %866 = vmatpush1.msra.mxu0 0.0
    %867 = vmatprep.subr.mxu0 0.0
    %868 = vmatpush1.msra.mxu0 0.0
    %869 = vmatprep.subr.mxu0 0.0
    %870 = vmatpush1.msra.mxu0 0.0
    %871 = vmatprep.subr.mxu0 0.0
    %872 = vmatpush1.msra.mxu0 0.0
    %873 = vmatprep.subr.mxu0 0.0
    %874 = vmatpush1.msra.mxu0 0.0
    %875 = vmatprep.subr.mxu0 0.0
    %876 = vmatpush1.msra.mxu0 0.0
    %877 = vmatprep.subr.mxu0 0.0
    %878 = vmatpush1.msra.mxu0 0.0
    %879 = vmatprep.subr.mxu0 0.0
    %880 = vmatpush1.msra.mxu0 0.0
    %881 = vmatprep.subr.mxu0 0.0
    %882 = vmatpush1.msra.mxu0 0.0
    %883 = vmatprep.mubr.f32.mxu0 0.0
    %884 = vmatmul.mubr.f32.gmra.mrb[0].mxu0 %v817
    %v885 = vpop.f32.mrb[0].mxu0
    %v886 = vadd.f32 0.0, %v885
    %v887 = vpop.f32.mrb[0].mxu0
    %888 = vdwg.mxu0
    %v889 = vadd.f32 %v213, %v886
    %v890 = vxor.u32 %v889, 2147483648
    %v891 = vmul.f32 %v890, 1.442695
    %v892 = vpow.pop %v891
    %v893 = vadd.f32 %v892, 1.0
    %v894 = vrcp.pop %v893
    %v895 = vmul.f32 1.0, %v894
    %v896 = vtanh.pop %v889
    %v897 = vmul.f32 %v895, %v784
    %899 = vrot.lane.b32.xlu0 %v896, 32
    %v900 = vpop.permute.xlu0 %899
    %v902 = vmul.f32 %v895, %v900
    %904 = vrot.lane.b32.xlu0 %v902, 32
    %v905 = vpop.permute.xlu0 %904
    %v907 = vadd.f32 %v897, %v905
    %v908 = vtanh.pop %v907
    %910 = vrot.lane.b32.xlu0 %v908, 32
    %v911 = vpop.permute.xlu0 %910
    %v913 = vmul.f32 %v895, %v911
    %v914 = vmul.f32 %v913, %v797
    %916 = vrot.lane.b32.xlu0 %v914, 64
    %v917 = vpop.permute.xlu0 %916
    %v919 = vsel %vm804, %v917, 0.0
    %920 = vadd.xlane.f32.xlu0 %v919
    %v921 = vpop.xlane.xlu0 %920
    %922 = vrot.lane.b32.xlu0 %v914, 48
    %v923 = vpop.permute.xlu0 %922
    %v925 = vsel %vm804, %v923, 0.0
    %926 = vadd.xlane.f32.xlu0 %v925
    %v927 = vpop.xlane.xlu0 %926
    %929 = vrot.lane.b32.xlu0 %v913, 64
    %v930 = vpop.permute.xlu0 %929
    %v931 = vsel %vm692, %v930, 0
    %933 = vmatprep.subr.mxu0 0.0
    %934 = vmatpush1.msra.mxu0 %v39
    %935 = vmatprep.subr.mxu0 0.0
    %936 = vmatpush1.msra.mxu0 %v40
    %937 = vmatprep.subr.mxu0 0.0
    %938 = vmatpush1.msra.mxu0 %v41
    %939 = vmatprep.subr.mxu0 0.0
    %940 = vmatpush1.msra.mxu0 %v42
    %941 = vmatprep.subr.mxu0 0.0
    %942 = vmatpush1.msra.mxu0 0.0
    %943 = vmatprep.subr.mxu0 0.0
    %944 = vmatpush1.msra.mxu0 0.0
    %945 = vmatprep.subr.mxu0 0.0
    %946 = vmatpush1.msra.mxu0 0.0
    %947 = vmatprep.subr.mxu0 0.0
    %948 = vmatpush1.msra.mxu0 0.0
    %949 = vmatprep.subr.mxu0 0.0
    %950 = vmatpush1.msra.mxu0 0.0
    %951 = vmatprep.subr.mxu0 0.0
    %952 = vmatpush1.msra.mxu0 0.0
    %953 = vmatprep.subr.mxu0 0.0
    %954 = vmatpush1.msra.mxu0 0.0
    %955 = vmatprep.subr.mxu0 0.0
    %956 = vmatpush1.msra.mxu0 0.0
    %957 = vmatprep.subr.mxu0 0.0
    %958 = vmatpush1.msra.mxu0 0.0
    %959 = vmatprep.subr.mxu0 0.0
    %960 = vmatpush1.msra.mxu0 0.0
    %961 = vmatprep.subr.mxu0 0.0
    %962 = vmatpush1.msra.mxu0 0.0
    %963 = vmatprep.subr.mxu0 0.0
    %964 = vmatpush1.msra.mxu0 0.0
    %965 = vmatprep.subr.mxu0 0.0
    %966 = vmatpush1.msra.mxu0 0.0
    %967 = vmatprep.subr.mxu0 0.0
    %968 = vmatpush1.msra.mxu0 0.0
    %969 = vmatprep.subr.mxu0 0.0
    %970 = vmatpush1.msra.mxu0 0.0
    %971 = vmatprep.subr.mxu0 0.0
    %972 = vmatpush1.msra.mxu0 0.0
    %973 = vmatprep.subr.mxu0 0.0
    %974 = vmatpush1.msra.mxu0 0.0
    %975 = vmatprep.subr.mxu0 0.0
    %976 = vmatpush1.msra.mxu0 0.0
    %977 = vmatprep.subr.mxu0 0.0
    %978 = vmatpush1.msra.mxu0 0.0
    %979 = vmatprep.subr.mxu0 0.0
    %980 = vmatpush1.msra.mxu0 0.0
    %981 = vmatprep.subr.mxu0 0.0
    %982 = vmatpush1.msra.mxu0 0.0
    %983 = vmatprep.subr.mxu0 0.0
    %984 = vmatpush1.msra.mxu0 0.0
    %985 = vmatprep.subr.mxu0 0.0
    %986 = vmatpush1.msra.mxu0 0.0
    %987 = vmatprep.subr.mxu0 0.0
    %988 = vmatpush1.msra.mxu0 0.0
    %989 = vmatprep.subr.mxu0 0.0
    %990 = vmatpush1.msra.mxu0 0.0
    %991 = vmatprep.subr.mxu0 0.0
    %992 = vmatpush1.msra.mxu0 0.0
    %993 = vmatprep.subr.mxu0 0.0
    %994 = vmatpush1.msra.mxu0 0.0
    %995 = vmatprep.subr.mxu0 0.0
    %996 = vmatpush1.msra.mxu0 0.0
    %997 = vmatprep.mubr.f32.mxu0 0.0
    %998 = vmatmul.mubr.f32.gmra.mrb[0].mxu0 %v931
    %v999 = vpop.f32.mrb[0].mxu0
    %v1000 = vadd.f32 0.0, %v999
    %v1001 = vpop.f32.mrb[0].mxu0
    %1002 = vdwg.mxu0
    %v1003 = vadd.f32 %v295, %v1000
    %v1004 = vxor.u32 %v1003, 2147483648
    %v1005 = vmul.f32 %v1004, 1.442695
    %v1006 = vpow.pop %v1005
    %v1007 = vadd.f32 %v1006, 1.0
    %v1008 = vrcp.pop %v1007
    %v1009 = vmul.f32 1.0, %v1008
    %v1010 = vtanh.pop %v1003
    %v1011 = vmul.f32 %v1009, %v907
    %1013 = vrot.lane.b32.xlu0 %v1010, 32
    %v1014 = vpop.permute.xlu0 %1013
    %v1016 = vmul.f32 %v1009, %v1014
    %1018 = vrot.lane.b32.xlu0 %v1016, 32
    %v1019 = vpop.permute.xlu0 %1018
    %v1021 = vadd.f32 %v1011, %v1019
    %v1022 = vtanh.pop %v1021
    %1024 = vrot.lane.b32.xlu0 %v1022, 32
    %v1025 = vpop.permute.xlu0 %1024
    %v1027 = vmul.f32 %v1009, %v1025
    %v1028 = vmul.f32 %v1027, %v797
    %1030 = vrot.lane.b32.xlu0 %v1028, 64
    %v1031 = vpop.permute.xlu0 %1030
    %v1033 = vsel %vm804, %v1031, 0.0
    %1034 = vadd.xlane.f32.xlu0 %v1033
    %v1035 = vpop.xlane.xlu0 %1034
    %1036 = vrot.lane.b32.xlu0 %v1028, 48
    %v1037 = vpop.permute.xlu0 %1036
    %v1039 = vsel %vm804, %v1037, 0.0
    %1040 = vadd.xlane.f32.xlu0 %v1039
    %v1041 = vpop.xlane.xlu0 %1040
    %1043 = vrot.lane.b32.xlu0 %v1027, 64
    %v1044 = vpop.permute.xlu0 %1043
    %v1045 = vsel %vm692, %v1044, 0
    %1047 = vmatprep.subr.mxu0 0.0
    %1048 = vmatpush1.msra.mxu0 %v39
    %1049 = vmatprep.subr.mxu0 0.0
    %1050 = vmatpush1.msra.mxu0 %v40
    %1051 = vmatprep.subr.mxu0 0.0
    %1052 = vmatpush1.msra.mxu0 %v41
    %1053 = vmatprep.subr.mxu0 0.0
    %1054 = vmatpush1.msra.mxu0 %v42
    %1055 = vmatprep.subr.mxu0 0.0
    %1056 = vmatpush1.msra.mxu0 0.0
    %1057 = vmatprep.subr.mxu0 0.0
    %1058 = vmatpush1.msra.mxu0 0.0
    %1059 = vmatprep.subr.mxu0 0.0
    %1060 = vmatpush1.msra.mxu0 0.0
    %1061 = vmatprep.subr.mxu0 0.0
    %1062 = vmatpush1.msra.mxu0 0.0
    %1063 = vmatprep.subr.mxu0 0.0
    %1064 = vmatpush1.msra.mxu0 0.0
    %1065 = vmatprep.subr.mxu0 0.0
    %1066 = vmatpush1.msra.mxu0 0.0
    %1067 = vmatprep.subr.mxu0 0.0
    %1068 = vmatpush1.msra.mxu0 0.0
    %1069 = vmatprep.subr.mxu0 0.0
    %1070 = vmatpush1.msra.mxu0 0.0
    %1071 = vmatprep.subr.mxu0 0.0
    %1072 = vmatpush1.msra.mxu0 0.0
    %1073 = vmatprep.subr.mxu0 0.0
    %1074 = vmatpush1.msra.mxu0 0.0
    %1075 = vmatprep.subr.mxu0 0.0
    %1076 = vmatpush1.msra.mxu0 0.0
    %1077 = vmatprep.subr.mxu0 0.0
    %1078 = vmatpush1.msra.mxu0 0.0
    %1079 = vmatprep.subr.mxu0 0.0
    %1080 = vmatpush1.msra.mxu0 0.0
    %1081 = vmatprep.subr.mxu0 0.0
    %1082 = vmatpush1.msra.mxu0 0.0
    %1083 = vmatprep.subr.mxu0 0.0
    %1084 = vmatpush1.msra.mxu0 0.0
    %1085 = vmatprep.subr.mxu0 0.0
    %1086 = vmatpush1.msra.mxu0 0.0
    %1087 = vmatprep.subr.mxu0 0.0
    %1088 = vmatpush1.msra.mxu0 0.0
    %1089 = vmatprep.subr.mxu0 0.0
    %1090 = vmatpush1.msra.mxu0 0.0
    %1091 = vmatprep.subr.mxu0 0.0
    %1092 = vmatpush1.msra.mxu0 0.0
    %1093 = vmatprep.subr.mxu0 0.0
    %1094 = vmatpush1.msra.mxu0 0.0
    %1095 = vmatprep.subr.mxu0 0.0
    %1096 = vmatpush1.msra.mxu0 0.0
    %1097 = vmatprep.subr.mxu0 0.0
    %1098 = vmatpush1.msra.mxu0 0.0
    %1099 = vmatprep.subr.mxu0 0.0
    %1100 = vmatpush1.msra.mxu0 0.0
    %1101 = vmatprep.subr.mxu0 0.0
    %1102 = vmatpush1.msra.mxu0 0.0
    %1103 = vmatprep.subr.mxu0 0.0
    %1104 = vmatpush1.msra.mxu0 0.0
    %1105 = vmatprep.subr.mxu0 0.0
    %1106 = vmatpush1.msra.mxu0 0.0
    %1107 = vmatprep.subr.mxu0 0.0
    %1108 = vmatpush1.msra.mxu0 0.0
    %1109 = vmatprep.subr.mxu0 0.0
    %1110 = vmatpush1.msra.mxu0 0.0
    %1111 = vmatprep.mubr.f32.mxu0 0.0
    %1112 = vmatmul.mubr.f32.gmra.mrb[0].mxu0 %v1045
    %v1113 = vpop.f32.mrb[0].mxu0
    %v1114 = vadd.f32 0.0, %v1113
    %v1115 = vpop.f32.mrb[0].mxu0
    %1116 = vdwg.mxu0
    %v1117 = vadd.f32 %v377, %v1114
    %v1118 = vxor.u32 %v1117, 2147483648
    %v1119 = vmul.f32 %v1118, 1.442695
    %v1120 = vpow.pop %v1119
    %v1121 = vadd.f32 %v1120, 1.0
    %v1122 = vrcp.pop %v1121
    %v1123 = vmul.f32 1.0, %v1122
    %v1124 = vtanh.pop %v1117
    %v1125 = vmul.f32 %v1123, %v1021
    %1127 = vrot.lane.b32.xlu0 %v1124, 32
    %v1128 = vpop.permute.xlu0 %1127
    %v1130 = vmul.f32 %v1123, %v1128
    %1132 = vrot.lane.b32.xlu0 %v1130, 32
    %v1133 = vpop.permute.xlu0 %1132
    %v1135 = vadd.f32 %v1125, %v1133
    %v1136 = vtanh.pop %v1135
    %1138 = vrot.lane.b32.xlu0 %v1136, 32
    %v1139 = vpop.permute.xlu0 %1138
    %v1141 = vmul.f32 %v1123, %v1139
    %v1142 = vmul.f32 %v1141, %v797
    %1144 = vrot.lane.b32.xlu0 %v1142, 64
    %v1145 = vpop.permute.xlu0 %1144
    %v1147 = vsel %vm804, %v1145, 0.0
    %1148 = vadd.xlane.f32.xlu0 %v1147
    %v1149 = vpop.xlane.xlu0 %1148
    %1150 = vrot.lane.b32.xlu0 %v1142, 48
    %v1151 = vpop.permute.xlu0 %1150
    %v1153 = vsel %vm804, %v1151, 0.0
    %1154 = vadd.xlane.f32.xlu0 %v1153
    %v1155 = vpop.xlane.xlu0 %1154
    %1157 = vrot.lane.b32.xlu0 %v1141, 64
    %v1158 = vpop.permute.xlu0 %1157
    %v1159 = vsel %vm692, %v1158, 0
    %1161 = vmatprep.subr.mxu0 0.0
    %1162 = vmatpush1.msra.mxu0 %v39
    %1163 = vmatprep.subr.mxu0 0.0
    %1164 = vmatpush1.msra.mxu0 %v40
    %1165 = vmatprep.subr.mxu0 0.0
    %1166 = vmatpush1.msra.mxu0 %v41
    %1167 = vmatprep.subr.mxu0 0.0
    %1168 = vmatpush1.msra.mxu0 %v42
    %1169 = vmatprep.subr.mxu0 0.0
    %1170 = vmatpush1.msra.mxu0 0.0
    %1171 = vmatprep.subr.mxu0 0.0
    %1172 = vmatpush1.msra.mxu0 0.0
    %1173 = vmatprep.subr.mxu0 0.0
    %1174 = vmatpush1.msra.mxu0 0.0
    %1175 = vmatprep.subr.mxu0 0.0
    %1176 = vmatpush1.msra.mxu0 0.0
    %1177 = vmatprep.subr.mxu0 0.0
    %1178 = vmatpush1.msra.mxu0 0.0
    %1179 = vmatprep.subr.mxu0 0.0
    %1180 = vmatpush1.msra.mxu0 0.0
    %1181 = vmatprep.subr.mxu0 0.0
    %1182 = vmatpush1.msra.mxu0 0.0
    %1183 = vmatprep.subr.mxu0 0.0
    %1184 = vmatpush1.msra.mxu0 0.0
    %1185 = vmatprep.subr.mxu0 0.0
    %1186 = vmatpush1.msra.mxu0 0.0
    %1187 = vmatprep.subr.mxu0 0.0
    %1188 = vmatpush1.msra.mxu0 0.0
    %1189 = vmatprep.subr.mxu0 0.0
    %1190 = vmatpush1.msra.mxu0 0.0
    %1191 = vmatprep.subr.mxu0 0.0
    %1192 = vmatpush1.msra.mxu0 0.0
    %1193 = vmatprep.subr.mxu0 0.0
    %1194 = vmatpush1.msra.mxu0 0.0
    %1195 = vmatprep.subr.mxu0 0.0
    %1196 = vmatpush1.msra.mxu0 0.0
    %1197 = vmatprep.subr.mxu0 0.0
    %1198 = vmatpush1.msra.mxu0 0.0
    %1199 = vmatprep.subr.mxu0 0.0
    %1200 = vmatpush1.msra.mxu0 0.0
    %1201 = vmatprep.subr.mxu0 0.0
    %1202 = vmatpush1.msra.mxu0 0.0
    %1203 = vmatprep.subr.mxu0 0.0
    %1204 = vmatpush1.msra.mxu0 0.0
    %1205 = vmatprep.subr.mxu0 0.0
    %1206 = vmatpush1.msra.mxu0 0.0
    %1207 = vmatprep.subr.mxu0 0.0
    %1208 = vmatpush1.msra.mxu0 0.0
    %1209 = vmatprep.subr.mxu0 0.0
    %1210 = vmatpush1.msra.mxu0 0.0
    %1211 = vmatprep.subr.mxu0 0.0
    %1212 = vmatpush1.msra.mxu0 0.0
    %1213 = vmatprep.subr.mxu0 0.0
    %1214 = vmatpush1.msra.mxu0 0.0
    %1215 = vmatprep.subr.mxu0 0.0
    %1216 = vmatpush1.msra.mxu0 0.0
    %1217 = vmatprep.subr.mxu0 0.0
    %1218 = vmatpush1.msra.mxu0 0.0
    %1219 = vmatprep.subr.mxu0 0.0
    %1220 = vmatpush1.msra.mxu0 0.0
    %1221 = vmatprep.subr.mxu0 0.0
    %1222 = vmatpush1.msra.mxu0 0.0
    %1223 = vmatprep.subr.mxu0 0.0
    %1224 = vmatpush1.msra.mxu0 0.0
    %1225 = vmatprep.mubr.f32.mxu0 0.0
    %1226 = vmatmul.mubr.f32.gmra.mrb[0].mxu0 %v1159
    %v1227 = vpop.f32.mrb[0].mxu0
    %v1228 = vadd.f32 0.0, %v1227
    %v1229 = vpop.f32.mrb[0].mxu0
    %1230 = vdwg.mxu0
    %v1231 = vadd.f32 %v455, %v1228
    %v1232 = vxor.u32 %v1231, 2147483648
    %v1233 = vmul.f32 %v1232, 1.442695
    %v1234 = vpow.pop %v1233
    %v1235 = vadd.f32 %v1234, 1.0
    %v1236 = vrcp.pop %v1235
    %v1237 = vmul.f32 1.0, %v1236
    %v1238 = vtanh.pop %v1231
    %v1239 = vmul.f32 %v1237, %v1135
    %1241 = vrot.lane.b32.xlu0 %v1238, 32
    %v1242 = vpop.permute.xlu0 %1241
    %v1244 = vmul.f32 %v1237, %v1242
    %1246 = vrot.lane.b32.xlu0 %v1244, 32
    %v1247 = vpop.permute.xlu0 %1246
    %v1249 = vadd.f32 %v1239, %v1247
    %v1250 = vtanh.pop %v1249
    %1252 = vrot.lane.b32.xlu0 %v1250, 32
    %v1253 = vpop.permute.xlu0 %1252
    %v1255 = vmul.f32 %v1237, %v1253
    %v1256 = vmul.f32 %v1255, %v797
    %1258 = vrot.lane.b32.xlu0 %v1256, 64
    %v1259 = vpop.permute.xlu0 %1258
    %v1261 = vsel %vm804, %v1259, 0.0
    %1262 = vadd.xlane.f32.xlu0 %v1261
    %v1263 = vpop.xlane.xlu0 %1262
    %1264 = vrot.lane.b32.xlu0 %v1256, 48
    %v1265 = vpop.permute.xlu0 %1264
    %v1267 = vsel %vm804, %v1265, 0.0
    %1268 = vadd.xlane.f32.xlu0 %v1267
    %v1269 = vpop.xlane.xlu0 %1268
    %1271 = vrot.lane.b32.xlu0 %v1255, 64
    %v1272 = vpop.permute.xlu0 %1271
    %v1273 = vsel %vm692, %v1272, 0
    %1275 = vmatprep.subr.mxu0 0.0
    %1276 = vmatpush1.msra.mxu0 %v39
    %1277 = vmatprep.subr.mxu0 0.0
    %1278 = vmatpush1.msra.mxu0 %v40
    %1279 = vmatprep.subr.mxu0 0.0
    %1280 = vmatpush1.msra.mxu0 %v41
    %1281 = vmatprep.subr.mxu0 0.0
    %1282 = vmatpush1.msra.mxu0 %v42
    %1283 = vmatprep.subr.mxu0 0.0
    %1284 = vmatpush1.msra.mxu0 0.0
    %1285 = vmatprep.subr.mxu0 0.0
    %1286 = vmatpush1.msra.mxu0 0.0
    %1287 = vmatprep.subr.mxu0 0.0
    %1288 = vmatpush1.msra.mxu0 0.0
    %1289 = vmatprep.subr.mxu0 0.0
    %1290 = vmatpush1.msra.mxu0 0.0
    %1291 = vmatprep.subr.mxu0 0.0
    %1292 = vmatpush1.msra.mxu0 0.0
    %1293 = vmatprep.subr.mxu0 0.0
    %1294 = vmatpush1.msra.mxu0 0.0
    %1295 = vmatprep.subr.mxu0 0.0
    %1296 = vmatpush1.msra.mxu0 0.0
    %1297 = vmatprep.subr.mxu0 0.0
    %1298 = vmatpush1.msra.mxu0 0.0
    %1299 = vmatprep.subr.mxu0 0.0
    %1300 = vmatpush1.msra.mxu0 0.0
    %1301 = vmatprep.subr.mxu0 0.0
    %1302 = vmatpush1.msra.mxu0 0.0
    %1303 = vmatprep.subr.mxu0 0.0
    %1304 = vmatpush1.msra.mxu0 0.0
    %1305 = vmatprep.subr.mxu0 0.0
    %1306 = vmatpush1.msra.mxu0 0.0
    %1307 = vmatprep.subr.mxu0 0.0
    %1308 = vmatpush1.msra.mxu0 0.0
    %1309 = vmatprep.subr.mxu0 0.0
    %1310 = vmatpush1.msra.mxu0 0.0
    %1311 = vmatprep.subr.mxu0 0.0
    %1312 = vmatpush1.msra.mxu0 0.0
    %1313 = vmatprep.subr.mxu0 0.0
    %1314 = vmatpush1.msra.mxu0 0.0
    %1315 = vmatprep.subr.mxu0 0.0
    %1316 = vmatpush1.msra.mxu0 0.0
    %1317 = vmatprep.subr.mxu0 0.0
    %1318 = vmatpush1.msra.mxu0 0.0
    %1319 = vmatprep.subr.mxu0 0.0
    %1320 = vmatpush1.msra.mxu0 0.0
    %1321 = vmatprep.subr.mxu0 0.0
    %1322 = vmatpush1.msra.mxu0 0.0
    %1323 = vmatprep.subr.mxu0 0.0
    %1324 = vmatpush1.msra.mxu0 0.0
    %1325 = vmatprep.subr.mxu0 0.0
    %1326 = vmatpush1.msra.mxu0 0.0
    %1327 = vmatprep.subr.mxu0 0.0
    %1328 = vmatpush1.msra.mxu0 0.0
    %1329 = vmatprep.subr.mxu0 0.0
    %1330 = vmatpush1.msra.mxu0 0.0
    %1331 = vmatprep.subr.mxu0 0.0
    %1332 = vmatpush1.msra.mxu0 0.0
    %1333 = vmatprep.subr.mxu0 0.0
    %1334 = vmatpush1.msra.mxu0 0.0
    %1335 = vmatprep.subr.mxu0 0.0
    %1336 = vmatpush1.msra.mxu0 0.0
    %1337 = vmatprep.subr.mxu0 0.0
    %1338 = vmatpush1.msra.mxu0 0.0
    %1339 = vmatprep.mubr.f32.mxu0 0.0
    %1340 = vmatmul.mubr.f32.gmra.mrb[0].mxu0 %v1273
    %v1341 = vpop.f32.mrb[0].mxu0
    %v1342 = vadd.f32 0.0, %v1341
    %v1343 = vpop.f32.mrb[0].mxu0
    %1344 = vdwg.mxu0
    %v1345 = vadd.f32 %v533, %v1342
    %v1346 = vxor.u32 %v1345, 2147483648
    %v1347 = vmul.f32 %v1346, 1.442695
    %v1348 = vpow.pop %v1347
    %v1349 = vadd.f32 %v1348, 1.0
    %v1350 = vrcp.pop %v1349
    %v1351 = vmul.f32 1.0, %v1350
    %v1352 = vtanh.pop %v1345
    %v1353 = vmul.f32 %v1351, %v1249
    %1355 = vrot.lane.b32.xlu0 %v1352, 32
    %v1356 = vpop.permute.xlu0 %1355
    %v1358 = vmul.f32 %v1351, %v1356
    %1360 = vrot.lane.b32.xlu0 %v1358, 32
    %v1361 = vpop.permute.xlu0 %1360
    %v1363 = vadd.f32 %v1353, %v1361
    %v1364 = vtanh.pop %v1363
    %1366 = vrot.lane.b32.xlu0 %v1364, 32
    %v1367 = vpop.permute.xlu0 %1366
    %v1369 = vmul.f32 %v1351, %v1367
    %v1370 = vmul.f32 %v1369, %v797
    %1372 = vrot.lane.b32.xlu0 %v1370, 64
    %v1373 = vpop.permute.xlu0 %1372
    %v1375 = vsel %vm804, %v1373, 0.0
    %1376 = vadd.xlane.f32.xlu0 %v1375
    %v1377 = vpop.xlane.xlu0 %1376
    %1378 = vrot.lane.b32.xlu0 %v1370, 48
    %v1379 = vpop.permute.xlu0 %1378
    %v1381 = vsel %vm804, %v1379, 0.0
    %1382 = vadd.xlane.f32.xlu0 %v1381
    %v1383 = vpop.xlane.xlu0 %1382
    %1385 = vrot.lane.b32.xlu0 %v1369, 64
    %v1386 = vpop.permute.xlu0 %1385
    %v1387 = vsel %vm692, %v1386, 0
    %1389 = vmatprep.subr.mxu0 0.0
    %1390 = vmatpush1.msra.mxu0 %v39
    %1391 = vmatprep.subr.mxu0 0.0
    %1392 = vmatpush1.msra.mxu0 %v40
    %1393 = vmatprep.subr.mxu0 0.0
    %1394 = vmatpush1.msra.mxu0 %v41
    %1395 = vmatprep.subr.mxu0 0.0
    %1396 = vmatpush1.msra.mxu0 %v42
    %1397 = vmatprep.subr.mxu0 0.0
    %1398 = vmatpush1.msra.mxu0 0.0
    %1399 = vmatprep.subr.mxu0 0.0
    %1400 = vmatpush1.msra.mxu0 0.0
    %1401 = vmatprep.subr.mxu0 0.0
    %1402 = vmatpush1.msra.mxu0 0.0
    %1403 = vmatprep.subr.mxu0 0.0
    %1404 = vmatpush1.msra.mxu0 0.0
    %1405 = vmatprep.subr.mxu0 0.0
    %1406 = vmatpush1.msra.mxu0 0.0
    %1407 = vmatprep.subr.mxu0 0.0
    %1408 = vmatpush1.msra.mxu0 0.0
    %1409 = vmatprep.subr.mxu0 0.0
    %1410 = vmatpush1.msra.mxu0 0.0
    %1411 = vmatprep.subr.mxu0 0.0
    %1412 = vmatpush1.msra.mxu0 0.0
    %1413 = vmatprep.subr.mxu0 0.0
    %1414 = vmatpush1.msra.mxu0 0.0
    %1415 = vmatprep.subr.mxu0 0.0
    %1416 = vmatpush1.msra.mxu0 0.0
    %1417 = vmatprep.subr.mxu0 0.0
    %1418 = vmatpush1.msra.mxu0 0.0
    %1419 = vmatprep.subr.mxu0 0.0
    %1420 = vmatpush1.msra.mxu0 0.0
    %1421 = vmatprep.subr.mxu0 0.0
    %1422 = vmatpush1.msra.mxu0 0.0
    %1423 = vmatprep.subr.mxu0 0.0
    %1424 = vmatpush1.msra.mxu0 0.0
    %1425 = vmatprep.subr.mxu0 0.0
    %1426 = vmatpush1.msra.mxu0 0.0
    %1427 = vmatprep.subr.mxu0 0.0
    %1428 = vmatpush1.msra.mxu0 0.0
    %1429 = vmatprep.subr.mxu0 0.0
    %1430 = vmatpush1.msra.mxu0 0.0
    %1431 = vmatprep.subr.mxu0 0.0
    %1432 = vmatpush1.msra.mxu0 0.0
    %1433 = vmatprep.subr.mxu0 0.0
    %1434 = vmatpush1.msra.mxu0 0.0
    %1435 = vmatprep.subr.mxu0 0.0
    %1436 = vmatpush1.msra.mxu0 0.0
    %1437 = vmatprep.subr.mxu0 0.0
    %1438 = vmatpush1.msra.mxu0 0.0
    %1439 = vmatprep.subr.mxu0 0.0
    %1440 = vmatpush1.msra.mxu0 0.0
    %1441 = vmatprep.subr.mxu0 0.0
    %1442 = vmatpush1.msra.mxu0 0.0
    %1443 = vmatprep.subr.mxu0 0.0
    %1444 = vmatpush1.msra.mxu0 0.0
    %1445 = vmatprep.subr.mxu0 0.0
    %1446 = vmatpush1.msra.mxu0 0.0
    %1447 = vmatprep.subr.mxu0 0.0
    %1448 = vmatpush1.msra.mxu0 0.0
    %1449 = vmatprep.subr.mxu0 0.0
    %1450 = vmatpush1.msra.mxu0 0.0
    %1451 = vmatprep.subr.mxu0 0.0
    %1452 = vmatpush1.msra.mxu0 0.0
    %1453 = vmatprep.mubr.f32.mxu0 0.0
    %1454 = vmatmul.mubr.f32.gmra.mrb[0].mxu0 %v1387
    %v1455 = vpop.f32.mrb[0].mxu0
    %v1456 = vadd.f32 0.0, %v1455
    %v1457 = vpop.f32.mrb[0].mxu0
    %1458 = vdwg.mxu0
    %v1459 = vadd.f32 %v611, %v1456
    %v1460 = vxor.u32 %v1459, 2147483648
    %v1461 = vmul.f32 %v1460, 1.442695
    %v1462 = vpow.pop %v1461
    %v1463 = vadd.f32 %v1462, 1.0
    %v1464 = vrcp.pop %v1463
    %v1465 = vmul.f32 1.0, %v1464
    %v1466 = vtanh.pop %v1459
    %v1467 = vmul.f32 %v1465, %v1363
    %1469 = vrot.lane.b32.xlu0 %v1466, 32
    %v1470 = vpop.permute.xlu0 %1469
    %v1472 = vmul.f32 %v1465, %v1470
    %1474 = vrot.lane.b32.xlu0 %v1472, 32
    %v1475 = vpop.permute.xlu0 %1474
    %v1477 = vadd.f32 %v1467, %v1475
    %v1478 = vtanh.pop %v1477
    %1480 = vrot.lane.b32.xlu0 %v1478, 32
    %v1481 = vpop.permute.xlu0 %1480
    %v1483 = vmul.f32 %v1465, %v1481
    %v1484 = vmul.f32 %v1483, %v797
    %1486 = vrot.lane.b32.xlu0 %v1484, 64
    %v1487 = vpop.permute.xlu0 %1486
    %v1489 = vsel %vm804, %v1487, 0.0
    %1490 = vadd.xlane.f32.xlu0 %v1489
    %v1491 = vpop.xlane.xlu0 %1490
    %1492 = vrot.lane.b32.xlu0 %v1484, 48
    %v1493 = vpop.permute.xlu0 %1492
    %v1495 = vsel %vm804, %v1493, 0.0
    %1496 = vadd.xlane.f32.xlu0 %v1495
    %v1497 = vpop.xlane.xlu0 %1496
    %1499 = vrot.lane.b32.xlu0 %v1483, 64
    %v1500 = vpop.permute.xlu0 %1499
    %v1501 = vsel %vm692, %v1500, 0
    %1503 = vmatprep.subr.mxu0 0.0
    %1504 = vmatpush1.msra.mxu0 %v39
    %1505 = vmatprep.subr.mxu0 0.0
    %1506 = vmatpush1.msra.mxu0 %v40
    %1507 = vmatprep.subr.mxu0 0.0
    %1508 = vmatpush1.msra.mxu0 %v41
    %1509 = vmatprep.subr.mxu0 0.0
    %1510 = vmatpush1.msra.mxu0 %v42
    %1511 = vmatprep.subr.mxu0 0.0
    %1512 = vmatpush1.msra.mxu0 0.0
    %1513 = vmatprep.subr.mxu0 0.0
    %1514 = vmatpush1.msra.mxu0 0.0
    %1515 = vmatprep.subr.mxu0 0.0
    %1516 = vmatpush1.msra.mxu0 0.0
    %1517 = vmatprep.subr.mxu0 0.0
    %1518 = vmatpush1.msra.mxu0 0.0
    %1519 = vmatprep.subr.mxu0 0.0
    %1520 = vmatpush1.msra.mxu0 0.0
    %1521 = vmatprep.subr.mxu0 0.0
    %1522 = vmatpush1.msra.mxu0 0.0
    %1523 = vmatprep.subr.mxu0 0.0
    %1524 = vmatpush1.msra.mxu0 0.0
    %1525 = vmatprep.subr.mxu0 0.0
    %1526 = vmatpush1.msra.mxu0 0.0
    %1527 = vmatprep.subr.mxu0 0.0
    %1528 = vmatpush1.msra.mxu0 0.0
    %1529 = vmatprep.subr.mxu0 0.0
    %1530 = vmatpush1.msra.mxu0 0.0
    %1531 = vmatprep.subr.mxu0 0.0
    %1532 = vmatpush1.msra.mxu0 0.0
    %1533 = vmatprep.subr.mxu0 0.0
    %1534 = vmatpush1.msra.mxu0 0.0
    %1535 = vmatprep.subr.mxu0 0.0
    %1536 = vmatpush1.msra.mxu0 0.0
    %1537 = vmatprep.subr.mxu0 0.0
    %1538 = vmatpush1.msra.mxu0 0.0
    %1539 = vmatprep.subr.mxu0 0.0
    %1540 = vmatpush1.msra.mxu0 0.0
    %1541 = vmatprep.subr.mxu0 0.0
    %1542 = vmatpush1.msra.mxu0 0.0
    %1543 = vmatprep.subr.mxu0 0.0
    %1544 = vmatpush1.msra.mxu0 0.0
    %1545 = vmatprep.subr.mxu0 0.0
    %1546 = vmatpush1.msra.mxu0 0.0
    %1547 = vmatprep.subr.mxu0 0.0
    %1548 = vmatpush1.msra.mxu0 0.0
    %1549 = vmatprep.subr.mxu0 0.0
    %1550 = vmatpush1.msra.mxu0 0.0
    %1551 = vmatprep.subr.mxu0 0.0
    %1552 = vmatpush1.msra.mxu0 0.0
    %1553 = vmatprep.subr.mxu0 0.0
    %1554 = vmatpush1.msra.mxu0 0.0
    %1555 = vmatprep.subr.mxu0 0.0
    %1556 = vmatpush1.msra.mxu0 0.0
    %1557 = vmatprep.subr.mxu0 0.0
    %1558 = vmatpush1.msra.mxu0 0.0
    %1559 = vmatprep.subr.mxu0 0.0
    %1560 = vmatpush1.msra.mxu0 0.0
    %1561 = vmatprep.subr.mxu0 0.0
    %1562 = vmatpush1.msra.mxu0 0.0
    %1563 = vmatprep.subr.mxu0 0.0
    %1564 = vmatpush1.msra.mxu0 0.0
    %1565 = vmatprep.subr.mxu0 0.0
    %1566 = vmatpush1.msra.mxu0 0.0
    %1567 = vmatprep.mubr.f32.mxu0 0.0
    %1568 = vmatmul.mubr.f32.gmra.mrb[0].mxu0 %v1501
    %v1569 = vpop.f32.mrb[0].mxu0
    %v1570 = vadd.f32 0.0, %v1569
    %v1571 = vpop.f32.mrb[0].mxu0
    %1572 = vdwg.mxu0
    %v1573 = vadd.f32 %v689, %v1570
    %v1574 = vxor.u32 %v1573, 2147483648
    %v1575 = vmul.f32 %v1574, 1.442695
    %v1576 = vpow.pop %v1575
    %v1577 = vadd.f32 %v1576, 1.0
    %v1578 = vrcp.pop %v1577
    %v1579 = vmul.f32 1.0, %v1578
    %v1580 = vtanh.pop %v1573
    %v1581 = vmul.f32 %v1579, %v1477
    %1583 = vrot.lane.b32.xlu0 %v1580, 32
    %v1584 = vpop.permute.xlu0 %1583
    %v1586 = vmul.f32 %v1579, %v1584
    %1588 = vrot.lane.b32.xlu0 %v1586, 32
    %v1589 = vpop.permute.xlu0 %1588
    %v1591 = vadd.f32 %v1581, %v1589
    %v1592 = vtanh.pop %v1591
    %1594 = vrot.lane.b32.xlu0 %v1592, 32
    %v1595 = vpop.permute.xlu0 %1594
    %v1597 = vmul.f32 %v1579, %v1595
    %v1598 = vmul.f32 %v1597, %v797
    %1600 = vrot.lane.b32.xlu0 %v1598, 64
    %v1601 = vpop.permute.xlu0 %1600
    %v1603 = vsel %vm804, %v1601, 0.0
    %1604 = vadd.xlane.f32.xlu0 %v1603
    %v1605 = vpop.xlane.xlu0 %1604
    %1606 = vrot.lane.b32.xlu0 %v1598, 48
    %v1607 = vpop.permute.xlu0 %1606
    %v1609 = vsel %vm804, %v1607, 0.0
    %1610 = vadd.xlane.f32.xlu0 %v1609
    %v1611 = vpop.xlane.xlu0 %1610
    %v1612 = vadd.f32 %v807, %v1611
    %v1613 = vadd.f32 %v921, %v1497
    %v1614 = vadd.f32 %v1035, %v1383
    %v1615 = vadd.f32 %v1149, %v1269
    %v1616 = vadd.f32 %v1263, %v1155
    %v1617 = vadd.f32 %v1377, %v1041
    %v1618 = vadd.f32 %v1491, %v927
    %v1619 = vadd.f32 %v1605, %v813
    %vm1620 = vcmask 7168
    %v1621 = vsel %vm1620, %v1612, %v1613
    %vm1622 = vcmask 15360
    %v1623 = vsel %vm1622, %v1621, %v1614
    %vm1624 = vcmask 23552
    %v1625 = vsel %vm1624, %v1623, %v1615
    %v1626 = vsel %vm58, %v1625, %v1616
    %vm1627 = vcmask 39936
    %v1628 = vsel %vm1627, %v1626, %v1617
    %vm1629 = vcmask 48128
    %v1630 = vsel %vm1629, %v1628, %v1618
    %vm1631 = vcmask 56320
    %v1632 = vsel %vm1631, %v1630, %v1619
    %vm1633 = vcmask 58368
    %v1634 = vsel %vm1633, %v1632, -inf
    %1635 = vmax.xlane.f32.xlu0 %v1634
    %v1636 = vpop.xlane.xlu0 %1635
    %v1637 = vsub.f32 %v1632, %v1636
    %v1638 = vmul.f32 %v1637, 1.442695
    %v1639 = vpow.pop %v1638
    %v1640 = vsel %vm1633, %v1639, 0.0
    %1641 = vadd.xlane.f32.xlu0 %v1640
    %v1642 = vpop.xlane.xlu0 %1641
    %v1643 = vrcp.pop %v1642
    %v1644 = vmul.f32 %v1639, %v1643
    %1645 = vst.msk [vmem:[#allocation6] sm:$0x3] %vm1633, %v1644
    %1647 = vset.pattern.permute.xlu0 0
    %1648 = vperm.xlu0 %1647, %v1644
    %v1649 = vpop.permute.xlu0 %1648
    %v1651 = vmul.f32 %v1649, %v790
    %v1652 = vadd.f32 %v1651, 0.0
    %v1653 = vmul.f32 %v1649, %v1597
    %v1654 = vadd.f32 %v1653, 0.0
    %1655 = vset.pattern.permute.xlu0 1
    %1656 = vperm.xlu0 %1655, %v1644
    %v1657 = vpop.permute.xlu0 %1656
    %v1659 = vmul.f32 %v1657, %v913
    %v1660 = vadd.f32 %v1652, %v1659
    %v1661 = vmul.f32 %v1657, %v1483
    %v1662 = vadd.f32 %v1654, %v1661
    %1663 = vset.pattern.permute.xlu0 2
    %1664 = vperm.xlu0 %1663, %v1644
    %v1665 = vpop.permute.xlu0 %1664
    %v1667 = vmul.f32 %v1665, %v1027
    %v1668 = vadd.f32 %v1660, %v1667
    %v1669 = vmul.f32 %v1665, %v1369
    %v1670 = vadd.f32 %v1662, %v1669
    %1671 = vset.pattern.permute.xlu0 3
    %1672 = vperm.xlu0 %1671, %v1644
    %v1673 = vpop.permute.xlu0 %1672
    %v1675 = vmul.f32 %v1673, %v1141
    %v1676 = vadd.f32 %v1668, %v1675
    %v1677 = vmul.f32 %v1673, %v1255
    %v1678 = vadd.f32 %v1670, %v1677
    %1679 = vset.pattern.permute.xlu0 4
    %1680 = vperm.xlu0 %1679, %v1644
    %v1681 = vpop.permute.xlu0 %1680
    %v1683 = vmul.f32 %v1681, %v1255
    %v1684 = vadd.f32 %v1676, %v1683
    %v1685 = vmul.f32 %v1681, %v1141
    %v1686 = vadd.f32 %v1678, %v1685
    %1687 = vset.pattern.permute.xlu0 5
    %1688 = vperm.xlu0 %1687, %v1644
    %v1689 = vpop.permute.xlu0 %1688
    %v1691 = vmul.f32 %v1689, %v1369
    %v1692 = vadd.f32 %v1684, %v1691
    %v1693 = vmul.f32 %v1689, %v1027
    %v1694 = vadd.f32 %v1686, %v1693
    %1695 = vset.pattern.permute.xlu0 6
    %1696 = vperm.xlu0 %1695, %v1644
    %v1697 = vpop.permute.xlu0 %1696
    %v1699 = vmul.f32 %v1697, %v1483
    %v1700 = vadd.f32 %v1692, %v1699
    %v1701 = vmul.f32 %v1697, %v913
    %v1702 = vadd.f32 %v1694, %v1701
    %1703 = vset.pattern.permute.xlu0 7
    %1704 = vperm.xlu0 %1703, %v1644
    %v1705 = vpop.permute.xlu0 %1704
    %v1707 = vmul.f32 %v1705, %v1597
    %v1708 = vadd.f32 %v1700, %v1707
    %v1709 = vmul.f32 %v1705, %v790
    %v1710 = vadd.f32 %v1702, %v1709
    %1712 = vrot.lane.b32.xlu0 %v1708, 64
    %v1713 = vpop.permute.xlu0 %1712
    %1716 = vrot.lane.b32.xlu0 %v1710, 64
    %v1717 = vpop.permute.xlu0 %1716
    %vm1719 = vcmask 130048
    %v1720 = vsel %vm1719, %v1713, %v1717
    %vm1721 = vcmask 254976
    %1722 = vst.msk [vmem:[#allocation5] sm:$0x3] %vm1721, %v1720
    // Predicated region
    $region26: #{tpu_custom_call.1} parent=1 // pred_check
      _
    $region27: #{tpu_custom_call.1} parent=1 // pred_check_branch
      %1724 = sbr.rel (0) target = $region29
    $region28: #{tpu_custom_call.1} parent=1 // pred_region
      %s1726 = ssub.s32 32, 32
      %1727 = vsyncadd [#allocation4], %s1726
      %s1729 = sshll.u32 [#allocation5], 4
      %s1730 = int_to_ptr.vmem [resolvable:$true] %s1729
      %1732 = dma.vmem_to_hbm [thread:$0]  %s1730, 32, %s5, [#allocation4]
    $region29: #{tpu_custom_call.1} parent=1 // pred_fallthru
      _
    // Predicated region
    $region30: #{tpu_custom_call.1} parent=1 // pred_check
      _
    $region31: #{tpu_custom_call.1} parent=1 // pred_check_branch
      %1734 = sbr.rel (0) target = $region33
    $region32: #{tpu_custom_call.1} parent=1 // pred_region
      %s1736 = ssub.s32 32, 32
      %1737 = vsyncadd [#allocation7], %s1736
      %s1739 = sshll.u32 [#allocation6], 4
      %s1740 = int_to_ptr.vmem [resolvable:$true] %s1739
      %1742 = dma.vmem_to_hbm [thread:$0]  %s1740, 32, %s6, [#allocation7]
    $region33: #{tpu_custom_call.1} parent=1 // pred_fallthru
      _
    // Predicated region
    $region34: #{tpu_custom_call.1} parent=1 // pred_check
      _
    $region35: #{tpu_custom_call.1} parent=1 // pred_check_branch
      %1744 = sbr.rel (0) target = $region37
    $region36: #{tpu_custom_call.1} parent=1 // pred_region
      %1745 = dma.done [#allocation4], 32
    $region37: #{tpu_custom_call.1} parent=1 // pred_fallthru
      _
    // Predicated region
    $region38: #{tpu_custom_call.1} parent=1 // pred_check
      _
    $region39: #{tpu_custom_call.1} parent=1 // pred_check_branch
      %1747 = sbr.rel (0) target = $region41
    $region40: #{tpu_custom_call.1} parent=1 // pred_region
      %1748 = dma.done [#allocation7], 32
    $region41: #{tpu_custom_call.1} parent=1 // pred_fallthru
      _
    %1749 = vsyncpa [#allocation3], 1
    %1750 = vsyncpa [#allocation4], 1
    %1751 = vsyncpa [#allocation7], 1

</llo_original>
